<compile_context>
chip_gen: v7x
topology: tpu7x:2x2x1
jax: 0.10.0
libtpu: 0.0.40
codegen_flags: <defaults>
</compile_context>

<pallas_src>
import jax
import jax.numpy as jnp
from jax.experimental import pallas as pl
from jax.experimental.pallas import tpu as pltpu

NEG_SLOPE = 0.01  # F.leaky_relu default


def _lrelu(x):
    return jnp.where(x >= 0, x, NEG_SLOPE * x)


def _round_up(x, m):
    return -(-x // m) * m


def _make_kernel(offsets, n2d, n3d, nj):
    """offsets: {layer_name: (row_offset, cout, cin)} into the packed weight slab."""

    def kernel(f2_ref, f3_ref, w_ref, out_ref):
        f2 = f2_ref[...].astype(jnp.float32)   # (C2, T) channels x points
        f3 = f3_ref[...].astype(jnp.float32)   # (C3, T)

        def layer(name, parts, act):
            r0, cout, cin = offsets[name]
            # Fuse the channel-concat into a single wider-K matmul.
            x = parts[0] if len(parts) == 1 else jnp.concatenate(parts, axis=0)
            w = w_ref[r0:r0 + cout, :cin]             # (cout, cin)
            b = w_ref[r0:r0 + cout, cin:cin + 1]      # (cout, 1)
            y = jnp.dot(w, x, preferred_element_type=jnp.float32) + b
            return _lrelu(y) if act else y

        # ---- 2D branch (eval mode: last conv of the branch is skipped) ----
        p2 = f2
        for i in range(n2d):
            p2 = layer(f"2d_{i}", [p2] if i == 0 else [p2, f2], act=True)
        # ---- 3D branch ----
        p3 = f3
        for i in range(n3d):
            p3 = layer(f"3d_{i}", [p3] if i == 0 else [p3, f3], act=True)
        # ---- joint branch: cat([pass, skip]) every layer ----
        pj = None
        for i in range(nj):
            parts = ([p2, p3] if i == 0 else [pj]) + [f2, f3]
            pj = layer(f"j_{i}", parts, act=(i != nj - 1))

        out_ref[...] = jax.nn.sigmoid(pj).astype(out_ref.dtype)   # last_op

    return kernel


def surface_classifier_joint(feature_2d, feature_3d, params, *, tile=1024):
    """feature_2d: (B, C2, N), feature_3d: (B, C3, N) -> [pred_joint (B, Cout, N)]"""
    assert tile % 128 == 0
    B, C2, N = feature_2d.shape
    Bb, C3, Nn = feature_3d.shape
    assert (B, N) == (Bb, Nn)

    # eval-mode layer program (last conv of each branch skipped)
    n2d = sum(1 for k in params if k.startswith("2d_")) - 1
    n3d = sum(1 for k in params if k.startswith("3d_")) - 1
    nj = sum(1 for k in params if k.startswith("j_"))
    order = ([f"2d_{i}" for i in range(n2d)] + [f"3d_{i}" for i in range(n3d)]
             + [f"j_{i}" for i in range(nj)])

    # Pack all used weights + biases into one zero-padded slab: rows
    # [r0:r0+cout] of each layer hold [W | b]; row blocks are 8-aligned.
    offsets, r, kmax = {}, 0, 1
    for name in order:
        W, _ = params[name]
        cout, cin = W.shape
        offsets[name] = (r, cout, cin)
        r += _round_up(cout, 8)
        kmax = max(kmax, cin + 1)
    rows, width = _round_up(r, 8), _round_up(kmax, 128)
    wslab = jnp.zeros((rows, width), jnp.float32)
    for name in order:
        W, b = params[name]
        r0, cout, cin = offsets[name]
        wslab = wslab.at[r0:r0 + cout, :cin + 1].set(
            jnp.concatenate([W, b[:, None]], axis=1))
    cout_last = offsets[f"j_{nj - 1}"][1]

    # Points tiling along the lane axis; pad N if it is not a tile multiple
    # (padded tail is computed on zeros and sliced away afterwards).
    tileN = min(tile, _round_up(N, 128))
    Np = _round_up(N, tileN)
    f2, f3 = feature_2d, feature_3d
    if Np != N:
        pad = ((0, 0), (0, 0), (0, Np - N))
        f2, f3 = jnp.pad(f2, pad), jnp.pad(f3, pad)

    grid = (B, Np // tileN)
    kernel = _make_kernel(offsets, n2d, n3d, nj)

    out = pl.pallas_call(
        kernel,
        out_shape=jax.ShapeDtypeStruct((B, cout_last, Np), jnp.float32),
        grid_spec=pltpu.PrefetchScalarGridSpec(
            num_scalar_prefetch=0,
            grid=grid,
            in_specs=[
                pl.BlockSpec((None, C2, tileN), lambda b, n: (b, 0, n)),
                pl.BlockSpec((None, C3, tileN), lambda b, n: (b, 0, n)),
                pl.BlockSpec(wslab.shape, lambda b, n: (0, 0)),
            ],
            out_specs=pl.BlockSpec((None, cout_last, tileN),
                                   lambda b, n: (b, 0, n)),
        ),
        compiler_params=pltpu.CompilerParams(
            dimension_semantics=("parallel", "parallel")),
    )(f2, f3, wslab)

    pred_joint = out[:, :, :N] if Np != N else out
    return [pred_joint]


def make_params(key, fc2d, fc3d, fcj_in):
    """Deterministic synthetic parameters, conv-style (out, in) weights + (out,) biases."""
    fcj = list(fcj_in)
    fcj[0] = fc2d[0] + fc3d[0]
    fused = fc2d[-2] + fc3d[-2]
    keys = iter(jax.random.split(key, 64))

    def conv(cin, cout):
        w = jax.random.normal(next(keys), (cout, cin), jnp.float32) * 0.2
        b = jax.random.normal(next(keys), (cout,), jnp.float32) * 0.1
        return w, b

    p = {}
    for i in range(len(fc2d) - 1):
        cin = fc2d[0] if i == 0 else fc2d[0] + fc2d[i]
        p[f"2d_{i}"] = conv(cin, fc2d[i + 1])        # last one unused in eval mode
    for i in range(len(fc3d) - 1):
        cin = fc3d[0] if i == 0 else fc3d[0] + fc3d[i]
        p[f"3d_{i}"] = conv(cin, fc3d[i + 1])        # last one unused in eval mode
    for i in range(len(fcj) - 1):
        cin = fcj[0] + (fused if i == 0 else fcj[i])
        p[f"j_{i}"] = conv(cin, fcj[i + 1])
    return p, fcj


def reference_forward(feature_2d, feature_3d, p):
    """Pure-JAX reference of the PyTorch forward (eval mode, sigmoid last_op)."""
    def conv1d(x, w, b):  # x (B,Cin,N), w (Cout,Cin), b (Cout,)
        return jnp.einsum("oc,bcn->bon", w, x) + b[None, :, None]

    lrelu = lambda x: jnp.where(x >= 0, x, NEG_SLOPE * x)
    f2, f3 = feature_2d, feature_3d
    h = lrelu(conv1d(f2, *p["2d_0"]))
    fuse2 = lrelu(conv1d(jnp.concatenate([h, f2], 1), *p["2d_1"]))
    g = lrelu(conv1d(f3, *p["3d_0"]))
    fuse3 = lrelu(conv1d(jnp.concatenate([g, f3], 1), *p["3d_1"]))
    skip = jnp.concatenate([f2, f3], 1)
    pp = jnp.concatenate([fuse2, fuse3], 1)
    pp = lrelu(conv1d(jnp.concatenate([pp, skip], 1), *p["j_0"]))
    pp = lrelu(conv1d(jnp.concatenate([pp, skip], 1), *p["j_1"]))
    pp = conv1d(jnp.concatenate([pp, skip], 1), *p["j_2"])
    return [jax.nn.sigmoid(pp)]


if __name__ == "__main__":
    key = jax.random.PRNGKey(0)
    k_f2, k_f3, k_p = jax.random.split(key, 3)

    B, N = 2, 2000                     # N deliberately NOT a multiple of the tile
    filter_channels_2d = [8, 16, 8, 1]
    filter_channels_3d = [8, 16, 8, 1]
    filter_channels_joint = [0, 16, 8, 1]   # [0] is overwritten in __init__

    params, _ = make_params(k_p, filter_channels_2d, filter_channels_3d,
                            filter_channels_joint)

    feature_2d = jax.random.normal(k_f2, (B, filter_channels_2d[0], N), jnp.float32)
    feature_3d = jax.random.normal(k_f3, (B, filter_channels_3d[0], N), jnp.float32)

    preds = surface_classifier_joint(feature_2d, feature_3d, params, tile=1024)
    preds = [jax.block_until_ready(p) for p in preds]

    refs = reference_forward(feature_2d, feature_3d, params)
    for got, want in zip(preds, refs):
        assert got.shape == want.shape, (got.shape, want.shape)
        err = float(jnp.max(jnp.abs(got - want)))
        assert err < 2e-5, err

    print("KERNEL_OK")
</pallas_src>

<mosaic_0001>
module attributes {stable_mosaic.version = 11 : i64} {
  func.func @kernel(%arg0: i32, %arg1: i32, %arg2: memref<1x8x1024xf32, #tpu.memory_space<vmem>>, %arg3: memref<1x8x1024xf32, #tpu.memory_space<vmem>>, %arg4: memref<80x128xf32, #tpu.memory_space<vmem>>, %arg5: memref<1x1x1024xf32, #tpu.memory_space<vmem>>) attributes {dimension_semantics = [#tpu.dimension_semantics<parallel>, #tpu.dimension_semantics<parallel>], iteration_bounds = array<i64: 2, 2>, scalar_prefetch = 0 : i64, scratch_operands = 0 : i64, tpu.core_type = #tpu.core_type<tc>, window_params = [{transform_indices = @transform_0, window_bounds = array<i64: 1, 8, 1024>}, {transform_indices = @transform_1, window_bounds = array<i64: 1, 8, 1024>}, {pipeline_mode = #tpu.pipeline_mode<synchronous>, transform_indices = @transform_2, window_bounds = array<i64: 80, 128>}, {transform_indices = @transform_3, window_bounds = array<i64: 1, 1, 1024>}]} {
    %c0 = arith.constant 0 : index
    %c0_0 = arith.constant 0 : index
    %c0_1 = arith.constant 0 : index
    %0 = vector.load %arg2[%c0, %c0_0, %c0_1] : memref<1x8x1024xf32, #tpu.memory_space<vmem>>, vector<1x8x1024xf32>
    %1 = vector.shape_cast %0 : vector<1x8x1024xf32> to vector<8x1024xf32>
    %c0_2 = arith.constant 0 : index
    %c0_3 = arith.constant 0 : index
    %c0_4 = arith.constant 0 : index
    %2 = vector.load %arg3[%c0_2, %c0_3, %c0_4] : memref<1x8x1024xf32, #tpu.memory_space<vmem>>, vector<1x8x1024xf32>
    %3 = vector.shape_cast %2 : vector<1x8x1024xf32> to vector<8x1024xf32>
    %c0_5 = arith.constant 0 : index
    %c0_6 = arith.constant 0 : index
    %4 = vector.load %arg4[%c0_5, %c0_6] : memref<80x128xf32, #tpu.memory_space<vmem>>, vector<16x8xf32>
    %c0_7 = arith.constant 0 : index
    %c8 = arith.constant 8 : index
    %5 = vector.load %arg4[%c0_7, %c8] : memref<80x128xf32, #tpu.memory_space<vmem>>, vector<16x1xf32>
    %cst = arith.constant dense<0.000000e+00> : vector<16x1024xf32>
    %6 = tpu.matmul %4, %1, %cst {dimension_numbers = #tpu.dot_dimension_numbers<[1], [0], [0], [1], [0, 0, 1, 1], [], []>} : vector<16x8xf32>, vector<8x1024xf32>, vector<16x1024xf32> -> vector<16x1024xf32>
    %7 = vector.broadcast %5 : vector<16x1xf32> to vector<16x1024xf32>
    %8 = arith.addf %6, %7 : vector<16x1024xf32>
    %cst_8 = arith.constant 0.000000e+00 : f32
    %9 = vector.broadcast %cst_8 : f32 to vector<16x1024xf32>
    %10 = arith.cmpf oge, %8, %9 : vector<16x1024xf32>
    %cst_9 = arith.constant 0.00999999977 : f32
    %11 = vector.broadcast %cst_9 : f32 to vector<16x1024xf32>
    %12 = arith.mulf %11, %8 : vector<16x1024xf32>
    %13 = arith.select %10, %8, %12 : vector<16x1024xi1>, vector<16x1024xf32>
    %14 = tpu.concatenate %13, %1 in 0 : vector<16x1024xf32>, vector<8x1024xf32> -> vector<24x1024xf32>
    %c16 = arith.constant 16 : index
    %c0_10 = arith.constant 0 : index
    %15 = vector.load %arg4[%c16, %c0_10] : memref<80x128xf32, #tpu.memory_space<vmem>>, vector<8x24xf32>
    %c16_11 = arith.constant 16 : index
    %c24 = arith.constant 24 : index
    %16 = vector.load %arg4[%c16_11, %c24] : memref<80x128xf32, #tpu.memory_space<vmem>>, vector<8x1xf32>
    %cst_12 = arith.constant dense<0.000000e+00> : vector<8x1024xf32>
    %17 = tpu.matmul %15, %14, %cst_12 {dimension_numbers = #tpu.dot_dimension_numbers<[1], [0], [0], [1], [0, 0, 1, 1], [], []>} : vector<8x24xf32>, vector<24x1024xf32>, vector<8x1024xf32> -> vector<8x1024xf32>
    %18 = vector.broadcast %16 : vector<8x1xf32> to vector<8x1024xf32>
    %19 = arith.addf %17, %18 : vector<8x1024xf32>
    %cst_13 = arith.constant 0.000000e+00 : f32
    %20 = vector.broadcast %cst_13 : f32 to vector<8x1024xf32>
    %21 = arith.cmpf oge, %19, %20 : vector<8x1024xf32>
    %cst_14 = arith.constant 0.00999999977 : f32
    %22 = vector.broadcast %cst_14 : f32 to vector<8x1024xf32>
    %23 = arith.mulf %22, %19 : vector<8x1024xf32>
    %24 = arith.select %21, %19, %23 : vector<8x1024xi1>, vector<8x1024xf32>
    %c24_15 = arith.constant 24 : index
    %c0_16 = arith.constant 0 : index
    %25 = vector.load %arg4[%c24_15, %c0_16] : memref<80x128xf32, #tpu.memory_space<vmem>>, vector<16x8xf32>
    %c24_17 = arith.constant 24 : index
    %c8_18 = arith.constant 8 : index
    %26 = vector.load %arg4[%c24_17, %c8_18] : memref<80x128xf32, #tpu.memory_space<vmem>>, vector<16x1xf32>
    %cst_19 = arith.constant dense<0.000000e+00> : vector<16x1024xf32>
    %27 = tpu.matmul %25, %3, %cst_19 {dimension_numbers = #tpu.dot_dimension_numbers<[1], [0], [0], [1], [0, 0, 1, 1], [], []>} : vector<16x8xf32>, vector<8x1024xf32>, vector<16x1024xf32> -> vector<16x1024xf32>
    %28 = vector.broadcast %26 : vector<16x1xf32> to vector<16x1024xf32>
    %29 = arith.addf %27, %28 : vector<16x1024xf32>
    %cst_20 = arith.constant 0.000000e+00 : f32
    %30 = vector.broadcast %cst_20 : f32 to vector<16x1024xf32>
    %31 = arith.cmpf oge, %29, %30 : vector<16x1024xf32>
    %cst_21 = arith.constant 0.00999999977 : f32
    %32 = vector.broadcast %cst_21 : f32 to vector<16x1024xf32>
    %33 = arith.mulf %32, %29 : vector<16x1024xf32>
    %34 = arith.select %31, %29, %33 : vector<16x1024xi1>, vector<16x1024xf32>
    %35 = tpu.concatenate %34, %3 in 0 : vector<16x1024xf32>, vector<8x1024xf32> -> vector<24x1024xf32>
    %c40 = arith.constant 40 : index
    %c0_22 = arith.constant 0 : index
    %36 = vector.load %arg4[%c40, %c0_22] : memref<80x128xf32, #tpu.memory_space<vmem>>, vector<8x24xf32>
    %c40_23 = arith.constant 40 : index
    %c24_24 = arith.constant 24 : index
    %37 = vector.load %arg4[%c40_23, %c24_24] : memref<80x128xf32, #tpu.memory_space<vmem>>, vector<8x1xf32>
    %cst_25 = arith.constant dense<0.000000e+00> : vector<8x1024xf32>
    %38 = tpu.matmul %36, %35, %cst_25 {dimension_numbers = #tpu.dot_dimension_numbers<[1], [0], [0], [1], [0, 0, 1, 1], [], []>} : vector<8x24xf32>, vector<24x1024xf32>, vector<8x1024xf32> -> vector<8x1024xf32>
    %39 = vector.broadcast %37 : vector<8x1xf32> to vector<8x1024xf32>
    %40 = arith.addf %38, %39 : vector<8x1024xf32>
    %cst_26 = arith.constant 0.000000e+00 : f32
    %41 = vector.broadcast %cst_26 : f32 to vector<8x1024xf32>
    %42 = arith.cmpf oge, %40, %41 : vector<8x1024xf32>
    %cst_27 = arith.constant 0.00999999977 : f32
    %43 = vector.broadcast %cst_27 : f32 to vector<8x1024xf32>
    %44 = arith.mulf %43, %40 : vector<8x1024xf32>
    %45 = arith.select %42, %40, %44 : vector<8x1024xi1>, vector<8x1024xf32>
    %46 = tpu.concatenate %24, %45, %1, %3 in 0 : vector<8x1024xf32>, vector<8x1024xf32>, vector<8x1024xf32>, vector<8x1024xf32> -> vector<32x1024xf32>
    %c48 = arith.constant 48 : index
    %c0_28 = arith.constant 0 : index
    %47 = vector.load %arg4[%c48, %c0_28] : memref<80x128xf32, #tpu.memory_space<vmem>>, vector<16x32xf32>
    %c48_29 = arith.constant 48 : index
    %c32 = arith.constant 32 : index
    %48 = vector.load %arg4[%c48_29, %c32] : memref<80x128xf32, #tpu.memory_space<vmem>>, vector<16x1xf32>
    %cst_30 = arith.constant dense<0.000000e+00> : vector<16x1024xf32>
    %49 = tpu.matmul %47, %46, %cst_30 {dimension_numbers = #tpu.dot_dimension_numbers<[1], [0], [0], [1], [0, 0, 1, 1], [], []>} : vector<16x32xf32>, vector<32x1024xf32>, vector<16x1024xf32> -> vector<16x1024xf32>
    %50 = vector.broadcast %48 : vector<16x1xf32> to vector<16x1024xf32>
    %51 = arith.addf %49, %50 : vector<16x1024xf32>
    %cst_31 = arith.constant 0.000000e+00 : f32
    %52 = vector.broadcast %cst_31 : f32 to vector<16x1024xf32>
    %53 = arith.cmpf oge, %51, %52 : vector<16x1024xf32>
    %cst_32 = arith.constant 0.00999999977 : f32
    %54 = vector.broadcast %cst_32 : f32 to vector<16x1024xf32>
    %55 = arith.mulf %54, %51 : vector<16x1024xf32>
    %56 = arith.select %53, %51, %55 : vector<16x1024xi1>, vector<16x1024xf32>
    %57 = tpu.concatenate %56, %1, %3 in 0 : vector<16x1024xf32>, vector<8x1024xf32>, vector<8x1024xf32> -> vector<32x1024xf32>
    %c64 = arith.constant 64 : index
    %c0_33 = arith.constant 0 : index
    %58 = vector.load %arg4[%c64, %c0_33] : memref<80x128xf32, #tpu.memory_space<vmem>>, vector<8x32xf32>
    %c64_34 = arith.constant 64 : index
    %c32_35 = arith.constant 32 : index
    %59 = vector.load %arg4[%c64_34, %c32_35] : memref<80x128xf32, #tpu.memory_space<vmem>>, vector<8x1xf32>
    %cst_36 = arith.constant dense<0.000000e+00> : vector<8x1024xf32>
    %60 = tpu.matmul %58, %57, %cst_36 {dimension_numbers = #tpu.dot_dimension_numbers<[1], [0], [0], [1], [0, 0, 1, 1], [], []>} : vector<8x32xf32>, vector<32x1024xf32>, vector<8x1024xf32> -> vector<8x1024xf32>
    %61 = vector.broadcast %59 : vector<8x1xf32> to vector<8x1024xf32>
    %62 = arith.addf %60, %61 : vector<8x1024xf32>
    %cst_37 = arith.constant 0.000000e+00 : f32
    %63 = vector.broadcast %cst_37 : f32 to vector<8x1024xf32>
    %64 = arith.cmpf oge, %62, %63 : vector<8x1024xf32>
    %cst_38 = arith.constant 0.00999999977 : f32
    %65 = vector.broadcast %cst_38 : f32 to vector<8x1024xf32>
    %66 = arith.mulf %65, %62 : vector<8x1024xf32>
    %67 = arith.select %64, %62, %66 : vector<8x1024xi1>, vector<8x1024xf32>
    %68 = tpu.concatenate %67, %1, %3 in 0 : vector<8x1024xf32>, vector<8x1024xf32>, vector<8x1024xf32> -> vector<24x1024xf32>
    %c72 = arith.constant 72 : index
    %c0_39 = arith.constant 0 : index
    %69 = vector.load %arg4[%c72, %c0_39] : memref<80x128xf32, #tpu.memory_space<vmem>>, vector<1x24xf32>
    %c72_40 = arith.constant 72 : index
    %c24_41 = arith.constant 24 : index
    %70 = vector.load %arg4[%c72_40, %c24_41] : memref<80x128xf32, #tpu.memory_space<vmem>>, vector<1x1xf32>
    %cst_42 = arith.constant dense<0.000000e+00> : vector<1x1024xf32>
    %71 = tpu.matmul %69, %68, %cst_42 {dimension_numbers = #tpu.dot_dimension_numbers<[1], [0], [0], [1], [0, 0, 1, 1], [], []>} : vector<1x24xf32>, vector<24x1024xf32>, vector<1x1024xf32> -> vector<1x1024xf32>
    %72 = vector.broadcast %70 : vector<1x1xf32> to vector<1x1024xf32>
    %73 = arith.addf %71, %72 : vector<1x1024xf32>
    %74 = arith.negf %73 : vector<1x1024xf32>
    %75 = math.exp %74 : vector<1x1024xf32>
    %cst_43 = arith.constant 1.000000e+00 : f32
    %76 = vector.broadcast %cst_43 : f32 to vector<1x1024xf32>
    %77 = arith.addf %76, %75 : vector<1x1024xf32>
    %78 = arith.divf %76, %77 : vector<1x1024xf32>
    %c0_44 = arith.constant 0 : index
    %c0_45 = arith.constant 0 : index
    %c0_46 = arith.constant 0 : index
    %79 = vector.load %arg5[%c0_44, %c0_45, %c0_46] : memref<1x1x1024xf32, #tpu.memory_space<vmem>>, vector<1x1x1024xf32>
    %80 = vector.shape_cast %79 : vector<1x1x1024xf32> to vector<1x1024xf32>
    %81 = vector.shape_cast %78 : vector<1x1024xf32> to vector<1x1x1024xf32>
    tpu.vector_store %arg5[%c0_44, %c0_45, %c0_46], %81 {strides = array<i32>} : memref<1x1x1024xf32, #tpu.memory_space<vmem>>, vector<1x1x1024xf32>,
    return
  }
  func.func @transform_0(%arg0: i32, %arg1: i32) -> (i32, i32, i32) {
    %c0_i32 = arith.constant 0 : i32
    %c0_i32_0 = arith.constant 0 : i32
    return %arg0, %c0_i32, %arg1 : i32, i32, i32
  }
  func.func @transform_1(%arg0: i32, %arg1: i32) -> (i32, i32, i32) {
    %c0_i32 = arith.constant 0 : i32
    %c0_i32_0 = arith.constant 0 : i32
    return %arg0, %c0_i32, %arg1 : i32, i32, i32
  }
  func.func @transform_2(%arg0: i32, %arg1: i32) -> (i32, i32) {
    %c0_i32 = arith.constant 0 : i32
    %c0_i32_0 = arith.constant 0 : i32
    %c0_i32_1 = arith.constant 0 : i32
    return %c0_i32, %c0_i32_0 : i32, i32
  }
  func.func @transform_3(%arg0: i32, %arg1: i32) -> (i32, i32, i32) {
    %c0_i32 = arith.constant 0 : i32
    %c0_i32_0 = arith.constant 0 : i32
    return %arg0, %c0_i32, %arg1 : i32, i32, i32
  }
}

</mosaic_0001>

<llo_original>
// kernel: tpu_custom_call.1
$region0: #{tpu_custom_call.1}
  #allocation0 [shape = 'u32[]', space=smem, size = 0x4, offset = 0x4, fixed_abs, tag = 'smem constant byte address 0x4 - core index']
  #allocation1 [shape = 'u32[144,128]{1,0:T(1,128)}', space=vmem, size = 0x12000, scoped, tag = 'internal scratch']
  %s0 = inlined_call_operand.hbm [shape: f32[2,8,2048], index: 0, kind: input, shape index: {}]
  %s1 = inlined_call_operand.hbm [shape: f32[2,8,2048], index: 1, kind: input, shape index: {}]
  %s2 = inlined_call_operand.hbm [shape: f32[80,128], index: 2, kind: input, shape index: {}]
  %s3 = inlined_call_operand.hbm [shape: f32[2,1,2048], index: 3, kind: output, shape index: {}]
  %s4 = sld [smem:[#allocation0]]
  $region57: #{tpu_custom_call.1} parent=0
    _
  %s6 = ssub.s32 1, %s4
  %s7 = scalar_select 0, %s6, %s4
  $region1: #{tpu_custom_call.1} parent=0
    #allocation2 [shape = 'u8[65536]{0}', space=vmem, size = 0x10000, scoped, tag = 'input window, operand 0']
    #allocation3 [shape = 's32[2]{0}', space=sflag, size = 0x8, scoped, tag = 'scoped memory for tpu_custom_call.1']
    #allocation4 [shape = 's32[2]{0}', space=sflag, size = 0x8, scoped, tag = 'scoped memory for tpu_custom_call.1']
    #allocation5 [shape = 'u8[65536]{0}', space=vmem, size = 0x10000, scoped, tag = 'input window, operand 1']
    #allocation6 [shape = 's32[2]{0}', space=sflag, size = 0x8, scoped, tag = 'scoped memory for tpu_custom_call.1']
    #allocation7 [shape = 'u8[40960]{0}', space=vmem, size = 0xa000, scoped, tag = 'input window, operand 2, single buffered']
    #allocation8 [shape = 'u8[8192]{0}', space=vmem, size = 0x2000, scoped, tag = 'output window, operand 0']
    %8 = vsyncpa [#allocation3], 0
    %s9 = scalar_lea.sflag [#allocation3], 1
    %10 = vsyncpa %s9, 0
    %11 = vsyncpa [#allocation6], 0
    %s12 = scalar_lea.sflag [#allocation6], 1
    %13 = vsyncpa %s12, 0
    %14 = vsyncpa [#allocation4], 0
    %s15 = scalar_lea.sflag [#allocation4], 1
    %16 = vsyncpa %s15, 0
    loop: start=0, step=1, limit=6
    $region2: #{tpu_custom_call.1} parent=1 // loop_pre_header
      _
    $region3: #{tpu_custom_call.1} parent=1 // loop_header
      %s18 = sphi 0, %s22
      %p19 = scmp.ge.s32.totalorder %s18, 6
      %s25 = sphi 0, %s37
      %s26 = sphi 0, %s33
      %s27 = sphi 0, %s25
      %s28 = sphi 0, %s26
      %s29 = sphi 0, %s27
      %s30 = sphi 0, %s28
      %s42 = sphi 0, %s44
      %s45 = sphi 0, %s42
      %s46 = sphi 0, %s45
      %s62 = sphi 0, %s46
      %s70 = sphi 0, %s72
      %s73 = sphi 0, %s70
      %s74 = sphi 0, %s73
      %s90 = sphi 0, %s74
      %s94 = sphi 0, %s94
      %s96 = sphi 0, %s94
      %s97 = sphi 0, %s96
      %s111 = sphi 0, %s97
      %s119 = sphi 0, %s121
      %s122 = sphi 0, %s119
      %s123 = sphi 0, %s122
      %s139 = sphi 0, %s123
    $region4: #{tpu_custom_call.1} parent=1 // loop_header_branch
      %21 = sbr.rel (%p19) target = $region8
    $region5: #{tpu_custom_call.1} parent=1 // loop_body
      %s23 = ssub.s32 %s18, 1
      %s24 = ssub.s32 %s18, 2
      %s31 = sadd.s32 1, %s26
      %p32 = scmp.ge.s32.totalorder %s31, 2
      %s33 = scalar_select %p32, 0, %s31
      %s34 = sadd.s32 1, %s25
      %s35 = scalar_select %p32, %s34, %s25
      %p36 = scmp.ge.s32.totalorder %s35, 2
      %s37 = scalar_select %p36, 0, %s35
      %s38 = ssub.s32 %s25, %s37
      %s39 = ssub.s32 %s26, %s33
      %s40 = sor.u32 %s38, %s39
      %p41 = scmp.eq.s32.totalorder %s40, 0
      %s43 = sadd.s32 %s42, 1
      %s44 = scalar_select %p41, %s42, %s43
      %p47 = pneg %p41
      %p48 = scmp.eq.s32.totalorder %s18, 3
      %p49 = por %p47, %p48
      %p50 = scmp.ne.s32.totalorder %s42, %s45
      %p51 = scmp.eq.s32.totalorder %s18, 0
      %p52 = por %p50, %p51
      %p53 = scmp.ne.s32.totalorder %s42, %s45
      %p54 = scmp.eq.s32.totalorder %s23, 3
      %p55 = por %p53, %p54
      %p56 = scmp.ne.s32.totalorder %s45, %s46
      %p57 = scmp.eq.s32.totalorder %s23, 0
      %p58 = por %p56, %p57
      %p59 = scmp.ne.s32.totalorder %s45, %s46
      %p60 = scmp.eq.s32.totalorder %s24, 3
      %p61 = por %p59, %p60
      %p63 = scmp.ne.s32.totalorder %s46, %s62
      %p64 = scmp.eq.s32.totalorder %s24, 0
      %p65 = por %p63, %p64
      %s66 = ssub.s32 %s25, %s37
      %s67 = ssub.s32 %s26, %s33
      %s68 = sor.u32 %s66, %s67
      %p69 = scmp.eq.s32.totalorder %s68, 0
      %s71 = sadd.s32 %s70, 1
      %s72 = scalar_select %p69, %s70, %s71
      %p75 = pneg %p69
      %p76 = scmp.eq.s32.totalorder %s18, 3
      %p77 = por %p75, %p76
      %p78 = scmp.ne.s32.totalorder %s70, %s73
      %p79 = scmp.eq.s32.totalorder %s18, 0
      %p80 = por %p78, %p79
      %p81 = scmp.ne.s32.totalorder %s70, %s73
      %p82 = scmp.eq.s32.totalorder %s23, 3
      %p83 = por %p81, %p82
      %p84 = scmp.ne.s32.totalorder %s73, %s74
      %p85 = scmp.eq.s32.totalorder %s23, 0
      %p86 = por %p84, %p85
      %p87 = scmp.ne.s32.totalorder %s73, %s74
      %p88 = scmp.eq.s32.totalorder %s24, 3
      %p89 = por %p87, %p88
      %p91 = scmp.ne.s32.totalorder %s74, %s90
      %p92 = scmp.eq.s32.totalorder %s24, 0
      %p93 = por %p91, %p92
      %s95 = sadd.s32 %s94, 1
      %p98 = scmp.eq.s32.totalorder %s18, 3
      %p99 = scmp.ne.s32.totalorder %s94, %s96
      %p100 = scmp.eq.s32.totalorder %s18, 0
      %p101 = por %p99, %p100
      %p102 = scmp.ne.s32.totalorder %s94, %s96
      %p103 = scmp.eq.s32.totalorder %s23, 3
      %p104 = por %p102, %p103
      %p105 = scmp.ne.s32.totalorder %s96, %s97
      %p106 = scmp.eq.s32.totalorder %s23, 0
      %p107 = por %p105, %p106
      %p108 = scmp.ne.s32.totalorder %s96, %s97
      %p109 = scmp.eq.s32.totalorder %s24, 3
      %p110 = por %p108, %p109
      %p112 = scmp.ne.s32.totalorder %s97, %s111
      %p113 = scmp.eq.s32.totalorder %s24, 0
      %p114 = por %p112, %p113
      %s115 = ssub.s32 %s25, %s37
      %s116 = ssub.s32 %s26, %s33
      %s117 = sor.u32 %s115, %s116
      %p118 = scmp.eq.s32.totalorder %s117, 0
      %s120 = sadd.s32 %s119, 1
      %s121 = scalar_select %p118, %s119, %s120
      %p124 = pneg %p118
      %p125 = scmp.eq.s32.totalorder %s18, 3
      %p126 = por %p124, %p125
      %p127 = scmp.ne.s32.totalorder %s119, %s122
      %p128 = scmp.eq.s32.totalorder %s18, 0
      %p129 = por %p127, %p128
      %p130 = scmp.ne.s32.totalorder %s119, %s122
      %p131 = scmp.eq.s32.totalorder %s23, 3
      %p132 = por %p130, %p131
      %p133 = scmp.ne.s32.totalorder %s122, %s123
      %p134 = scmp.eq.s32.totalorder %s23, 0
      %p135 = por %p133, %p134
      %p136 = scmp.ne.s32.totalorder %s122, %s123
      %p137 = scmp.eq.s32.totalorder %s24, 3
      %p138 = por %p136, %p137
      %p140 = scmp.ne.s32.totalorder %s123, %s139
      %p141 = scmp.eq.s32.totalorder %s24, 0
      %p142 = por %p140, %p141
      %p143 = scmp.le.s32.totalorder 1, %s18
      %p144 = scmp.lt.s32.totalorder %s18, 5
      %p145 = pnand %p143, %p144
      %p146 = pneg %p145
      // Predicated region
      $region9: #{tpu_custom_call.1} parent=5 // pred_check
        _
      $region10: #{tpu_custom_call.1} parent=5 // pred_check_branch
        %148 = sbr.rel (%p145) target = $region12
      $region11: #{tpu_custom_call.1} parent=5 // pred_region
        %s149 = ssub.s32 %s18, 1
        // Predicated region
        $region13: #{tpu_custom_call.1} parent=11 // pred_check
          %p150 = pneg %p107
        $region14: #{tpu_custom_call.1} parent=11 // pred_check_branch
          %152 = sbr.rel (%p150) target = $region16
        $region15: #{tpu_custom_call.1} parent=11 // pred_region
          %s154 = ssub.s32 1280, 1280
          %155 = vsyncadd [#allocation6], %s154
          %s156 = sshll.u32 [#allocation7], 4
          %s157 = int_to_ptr.vmem [resolvable:$true] %s156
          %162 = dma.hbm_to_vmem [thread:$0]  %s2, 1280, %s157, [#allocation6], 128, 128, 8
        $region16: #{tpu_custom_call.1} parent=11 // pred_fallthru
          _
      $region12: #{tpu_custom_call.1} parent=5 // pred_fallthru
        _
      %p163 = scmp.lt.s32.totalorder %s18, 4
      // Predicated region
      $region17: #{tpu_custom_call.1} parent=5 // pred_check
        %p164 = pneg %p163
      $region18: #{tpu_custom_call.1} parent=5 // pred_check_branch
        %166 = sbr.rel (%p164) target = $region20
      $region19: #{tpu_custom_call.1} parent=5 // pred_region
        // Predicated region
        $region21: #{tpu_custom_call.1} parent=19 // pred_check
          %p167 = pneg %p52
        $region22: #{tpu_custom_call.1} parent=19 // pred_check_branch
          %169 = sbr.rel (%p167) target = $region24
        $region23: #{tpu_custom_call.1} parent=19 // pred_region
          %s170 = sand.u32 %s42, 1
          %s171 = scalar_lea.sflag [#allocation3], %s170
          %s172 = sand.u32 %s42, 1
          %s173 = smul.addr %s172, 64
          %s174 = scalar_lea.vmem [#allocation2], %s173
          %s175 = smul.u32 8, %s26
          %s177 = ssub.s32 1024, 1024
          %178 = vsyncadd %s171, %s177
          %s179 = smul.addr %s25, 16
          %s180 = sadd.s32 %s175, %s179
          %s181 = smul.addr %s180, 128
          %s182 = scalar_lea.hbm %s0, %s181
          %s184 = sshll.u32 %s174, 4
          %s185 = int_to_ptr.vmem [resolvable:$true] %s184
          %187 = dma.hbm_to_vmem [thread:$0]  %s182, 1024, %s185, %s171
        $region24: #{tpu_custom_call.1} parent=19 // pred_fallthru
          _
        // Predicated region
        $region25: #{tpu_custom_call.1} parent=19 // pred_check
          %p188 = pneg %p80
        $region26: #{tpu_custom_call.1} parent=19 // pred_check_branch
          %190 = sbr.rel (%p188) target = $region28
        $region27: #{tpu_custom_call.1} parent=19 // pred_region
          %s191 = sand.u32 %s18, 1
          %s192 = scalar_lea.sflag [#allocation6], %s191
          %s193 = sand.u32 %s70, 1
          %s194 = smul.addr %s193, 64
          %s195 = scalar_lea.vmem [#allocation5], %s194
          %s196 = smul.u32 8, %s26
          %s198 = ssub.s32 1024, 1024
          %199 = vsyncadd %s192, %s198
          %s200 = smul.addr %s25, 16
          %s201 = sadd.s32 %s196, %s200
          %s202 = smul.addr %s201, 128
          %s203 = scalar_lea.hbm %s1, %s202
          %s205 = sshll.u32 %s195, 4
          %s206 = int_to_ptr.vmem [resolvable:$true] %s205
          %208 = dma.hbm_to_vmem [thread:$0]  %s203, 1024, %s206, %s192
        $region28: #{tpu_custom_call.1} parent=19 // pred_fallthru
          _
      $region20: #{tpu_custom_call.1} parent=5 // pred_fallthru
        _
      %p209 = scmp.le.s32.totalorder 1, %s18
      %p210 = scmp.lt.s32.totalorder %s18, 5
      %p211 = pnand %p209, %p210
      %p212 = pneg %p211
      // Predicated region
      $region29: #{tpu_custom_call.1} parent=5 // pred_check
        _
      $region30: #{tpu_custom_call.1} parent=5 // pred_check_branch
        %214 = sbr.rel (%p211) target = $region32
      $region31: #{tpu_custom_call.1} parent=5 // pred_region
        %s215 = ssub.s32 %s18, 1
        %s216 = sand.u32 %s45, 1
        %s217 = scalar_lea.sflag [#allocation3], %s216
        %s218 = sand.u32 %s45, 1
        %s219 = smul.addr %s218, 64
        %s220 = scalar_lea.vmem [#allocation2], %s219
        // Predicated region
        $region33: #{tpu_custom_call.1} parent=31 // pred_check
          %p221 = pneg %p58
        $region34: #{tpu_custom_call.1} parent=31 // pred_check_branch
          %223 = sbr.rel (%p221) target = $region36
        $region35: #{tpu_custom_call.1} parent=31 // pred_region
          %224 = dma.done %s217, 1024
        $region36: #{tpu_custom_call.1} parent=31 // pred_fallthru
          _
        %s225 = sand.u32 %s23, 1
        %s226 = scalar_lea.sflag [#allocation6], %s225
        %s227 = sand.u32 %s73, 1
        %s228 = smul.addr %s227, 64
        %s229 = scalar_lea.vmem [#allocation5], %s228
        // Predicated region
        $region37: #{tpu_custom_call.1} parent=31 // pred_check
          %p230 = pneg %p86
        $region38: #{tpu_custom_call.1} parent=31 // pred_check_branch
          %232 = sbr.rel (%p230) target = $region40
        $region39: #{tpu_custom_call.1} parent=31 // pred_region
          %233 = dma.done %s226, 1024
        $region40: #{tpu_custom_call.1} parent=31 // pred_fallthru
          _
        // Predicated region
        $region41: #{tpu_custom_call.1} parent=31 // pred_check
          %p234 = pneg %p107
        $region42: #{tpu_custom_call.1} parent=31 // pred_check_branch
          %236 = sbr.rel (%p234) target = $region44
        $region43: #{tpu_custom_call.1} parent=31 // pred_region
          %237 = dma.done [#allocation6], 1280
        $region44: #{tpu_custom_call.1} parent=31 // pred_fallthru
          _
        %s238 = sand.u32 %s45, 1
        %s239 = scalar_lea.sflag [#allocation3], %s238
        %s240 = sand.u32 %s45, 1
        %s241 = smul.addr %s240, 64
        %s242 = scalar_lea.vmem [#allocation2], %s241
        %p243 = pneg %p58
        %p244 = pneg %p55
        %s245 = sand.u32 %s23, 1
        %s246 = scalar_lea.sflag [#allocation6], %s245
        %s247 = sand.u32 %s73, 1
        %s248 = smul.addr %s247, 64
        %s249 = scalar_lea.vmem [#allocation5], %s248
        %p250 = pneg %p86
        %p251 = pneg %p83
        %p252 = pneg %p107
        %p253 = pneg %p104
        %p254 = pneg %p135
        %p255 = pneg %p132
        %s256 = sand.u32 %s122, 1
        %s257 = scalar_lea.sflag [#allocation4], %s256
        %s258 = sand.u32 %s122, 1
        %s259 = smul.addr %s258, 8
        %s260 = scalar_lea.vmem [#allocation8], %s259
        %s261 = smul.u32 8, %s28
        %s262 = smul.u32 8, %s28
        %s263 = smul.u32 8, %s28
        %v264 = vld [vmem:[%s220] sm:$0xff]
        %v265 = vld [vmem:[%s220 + $0x8] sm:$0xff]
        %v266 = vld [vmem:[%s220 + $0x10] sm:$0xff]
        %v267 = vld [vmem:[%s220 + $0x18] sm:$0xff]
        %v268 = vld [vmem:[%s220 + $0x20] sm:$0xff]
        %v269 = vld [vmem:[%s220 + $0x28] sm:$0xff]
        %v270 = vld [vmem:[%s220 + $0x30] sm:$0xff]
        %v271 = vld [vmem:[%s220 + $0x38] sm:$0xff]
        %v272 = vld [vmem:[%s229] sm:$0xff]
        %v273 = vld [vmem:[%s229 + $0x8] sm:$0xff]
        %v274 = vld [vmem:[%s229 + $0x10] sm:$0xff]
        %v275 = vld [vmem:[%s229 + $0x18] sm:$0xff]
        %v276 = vld [vmem:[%s229 + $0x20] sm:$0xff]
        %v277 = vld [vmem:[%s229 + $0x28] sm:$0xff]
        %v278 = vld [vmem:[%s229 + $0x30] sm:$0xff]
        %v279 = vld [vmem:[%s229 + $0x38] sm:$0xff]
        %v280 = vld [vmem:[#allocation7] sm:$0xff]
        %v281 = vld [vmem:[#allocation7 + $0x8] sm:$0xff]
        %283 = vset.pattern.permute.xlu0 8
        %284 = vperm.xlu0 %283, %v280
        %v285 = vpop.permute.xlu0 %284
        %288 = vset.pattern.permute.xlu0 8
        %289 = vperm.xlu0 %288, %v281
        %v290 = vpop.permute.xlu0 %289
        %vm292 = vcmask 64512
        %v293 = vsel %vm292, %v280, 0
        %v295 = vsel %vm292, %v281, 0
        %297 = vmatprep.subr.mxu0 %v265
        %298 = vmatpush1.msra.mxu0 %v264
        %299 = vmatprep.subr.mxu0 0.0
        %300 = vmatpush1.msra.mxu0 0.0
        %301 = vmatprep.subr.mxu0 0.0
        %302 = vmatpush1.msra.mxu0 0.0
        %303 = vmatprep.subr.mxu0 0.0
        %304 = vmatpush1.msra.mxu0 0.0
        %305 = vmatprep.subr.mxu0 0.0
        %306 = vmatpush1.msra.mxu0 0.0
        %307 = vmatprep.subr.mxu0 0.0
        %308 = vmatpush1.msra.mxu0 0.0
        %309 = vmatprep.subr.mxu0 0.0
        %310 = vmatpush1.msra.mxu0 0.0
        %311 = vmatprep.subr.mxu0 0.0
        %312 = vmatpush1.msra.mxu0 0.0
        %313 = vmatprep.subr.mxu0 0.0
        %314 = vmatpush1.msra.mxu0 0.0
        %315 = vmatprep.subr.mxu0 0.0
        %316 = vmatpush1.msra.mxu0 0.0
        %317 = vmatprep.subr.mxu0 0.0
        %318 = vmatpush1.msra.mxu0 0.0
        %319 = vmatprep.subr.mxu0 0.0
        %320 = vmatpush1.msra.mxu0 0.0
        %321 = vmatprep.subr.mxu0 0.0
        %322 = vmatpush1.msra.mxu0 0.0
        %323 = vmatprep.subr.mxu0 0.0
        %324 = vmatpush1.msra.mxu0 0.0
        %325 = vmatprep.subr.mxu0 0.0
        %326 = vmatpush1.msra.mxu0 0.0
        %327 = vmatprep.subr.mxu0 0.0
        %328 = vmatpush1.msra.mxu0 0.0
        %329 = vmatprep.subr.mxu0 0.0
        %330 = vmatpush1.msra.mxu0 0.0
        %331 = vmatprep.subr.mxu0 0.0
        %332 = vmatpush1.msra.mxu0 0.0
        %333 = vmatprep.subr.mxu0 0.0
        %334 = vmatpush1.msra.mxu0 0.0
        %335 = vmatprep.subr.mxu0 0.0
        %336 = vmatpush1.msra.mxu0 0.0
        %337 = vmatprep.subr.mxu0 0.0
        %338 = vmatpush1.msra.mxu0 0.0
        %339 = vmatprep.subr.mxu0 0.0
        %340 = vmatpush1.msra.mxu0 0.0
        %341 = vmatprep.subr.mxu0 0.0
        %342 = vmatpush1.msra.mxu0 0.0
        %343 = vmatprep.subr.mxu0 0.0
        %344 = vmatpush1.msra.mxu0 0.0
        %345 = vmatprep.subr.mxu0 0.0
        %346 = vmatpush1.msra.mxu0 0.0
        %347 = vmatprep.subr.mxu0 0.0
        %348 = vmatpush1.msra.mxu0 0.0
        %349 = vmatprep.subr.mxu0 0.0
        %350 = vmatpush1.msra.mxu0 0.0
        %351 = vmatprep.subr.mxu0 0.0
        %352 = vmatpush1.msra.mxu0 0.0
        %353 = vmatprep.subr.mxu0 0.0
        %354 = vmatpush1.msra.mxu0 0.0
        %355 = vmatprep.subr.mxu0 0.0
        %356 = vmatpush1.msra.mxu0 0.0
        %357 = vmatprep.subr.mxu0 0.0
        %358 = vmatpush1.msra.mxu0 0.0
        %359 = vmatprep.subr.mxu0 0.0
        %360 = vmatpush1.msra.mxu0 0.0
        %361 = vmatprep.mubr.f32.mxu0 0.0
        %362 = vmatmul.mubr.f32.gmra.mrb[0].mxu0 %v293
        %v363 = vpop.f32.mrb[0].mxu0
        %v364 = vadd.f32 %v285, %v363
        %v365 = vpop.f32.mrb[0].mxu0
        %v366 = vadd.f32 %v285, %v365
        %367 = vmatprep.mubr.f32.mxu0 0.0
        %368 = vmatmul.mubr.f32.gmra.mrb[0].mxu0 %v295
        %v369 = vpop.f32.mrb[0].mxu0
        %v370 = vadd.f32 %v290, %v369
        %v371 = vpop.f32.mrb[0].mxu0
        %v372 = vadd.f32 %v290, %v371
        %373 = vdwg.mxu0
        %374 = vmatprep.subr.mxu0 %v267
        %375 = vmatpush1.msra.mxu0 %v266
        %376 = vmatprep.subr.mxu0 0.0
        %377 = vmatpush1.msra.mxu0 0.0
        %378 = vmatprep.subr.mxu0 0.0
        %379 = vmatpush1.msra.mxu0 0.0
        %380 = vmatprep.subr.mxu0 0.0
        %381 = vmatpush1.msra.mxu0 0.0
        %382 = vmatprep.subr.mxu0 0.0
        %383 = vmatpush1.msra.mxu0 0.0
        %384 = vmatprep.subr.mxu0 0.0
        %385 = vmatpush1.msra.mxu0 0.0
        %386 = vmatprep.subr.mxu0 0.0
        %387 = vmatpush1.msra.mxu0 0.0
        %388 = vmatprep.subr.mxu0 0.0
        %389 = vmatpush1.msra.mxu0 0.0
        %390 = vmatprep.subr.mxu0 0.0
        %391 = vmatpush1.msra.mxu0 0.0
        %392 = vmatprep.subr.mxu0 0.0
        %393 = vmatpush1.msra.mxu0 0.0
        %394 = vmatprep.subr.mxu0 0.0
        %395 = vmatpush1.msra.mxu0 0.0
        %396 = vmatprep.subr.mxu0 0.0
        %397 = vmatpush1.msra.mxu0 0.0
        %398 = vmatprep.subr.mxu0 0.0
        %399 = vmatpush1.msra.mxu0 0.0
        %400 = vmatprep.subr.mxu0 0.0
        %401 = vmatpush1.msra.mxu0 0.0
        %402 = vmatprep.subr.mxu0 0.0
        %403 = vmatpush1.msra.mxu0 0.0
        %404 = vmatprep.subr.mxu0 0.0
        %405 = vmatpush1.msra.mxu0 0.0
        %406 = vmatprep.subr.mxu0 0.0
        %407 = vmatpush1.msra.mxu0 0.0
        %408 = vmatprep.subr.mxu0 0.0
        %409 = vmatpush1.msra.mxu0 0.0
        %410 = vmatprep.subr.mxu0 0.0
        %411 = vmatpush1.msra.mxu0 0.0
        %412 = vmatprep.subr.mxu0 0.0
        %413 = vmatpush1.msra.mxu0 0.0
        %414 = vmatprep.subr.mxu0 0.0
        %415 = vmatpush1.msra.mxu0 0.0
        %416 = vmatprep.subr.mxu0 0.0
        %417 = vmatpush1.msra.mxu0 0.0
        %418 = vmatprep.subr.mxu0 0.0
        %419 = vmatpush1.msra.mxu0 0.0
        %420 = vmatprep.subr.mxu0 0.0
        %421 = vmatpush1.msra.mxu0 0.0
        %422 = vmatprep.subr.mxu0 0.0
        %423 = vmatpush1.msra.mxu0 0.0
        %424 = vmatprep.subr.mxu0 0.0
        %425 = vmatpush1.msra.mxu0 0.0
        %426 = vmatprep.subr.mxu0 0.0
        %427 = vmatpush1.msra.mxu0 0.0
        %428 = vmatprep.subr.mxu0 0.0
        %429 = vmatpush1.msra.mxu0 0.0
        %430 = vmatprep.subr.mxu0 0.0
        %431 = vmatpush1.msra.mxu0 0.0
        %432 = vmatprep.subr.mxu0 0.0
        %433 = vmatpush1.msra.mxu0 0.0
        %434 = vmatprep.subr.mxu0 0.0
        %435 = vmatpush1.msra.mxu0 0.0
        %436 = vmatprep.subr.mxu0 0.0
        %437 = vmatpush1.msra.mxu0 0.0
        %438 = vmatprep.mubr.f32.mxu0 0.0
        %439 = vmatmul.mubr.f32.gmra.mrb[0].mxu0 %v293
        %v440 = vpop.f32.mrb[0].mxu0
        %v441 = vadd.f32 %v285, %v440
        %v442 = vpop.f32.mrb[0].mxu0
        %v443 = vadd.f32 %v285, %v442
        %444 = vmatprep.mubr.f32.mxu0 0.0
        %445 = vmatmul.mubr.f32.gmra.mrb[0].mxu0 %v295
        %v446 = vpop.f32.mrb[0].mxu0
        %v447 = vadd.f32 %v290, %v446
        %v448 = vpop.f32.mrb[0].mxu0
        %v449 = vadd.f32 %v290, %v448
        %450 = vdwg.mxu0
        %451 = vmatprep.subr.mxu0 %v269
        %452 = vmatpush1.msra.mxu0 %v268
        %453 = vmatprep.subr.mxu0 0.0
        %454 = vmatpush1.msra.mxu0 0.0
        %455 = vmatprep.subr.mxu0 0.0
        %456 = vmatpush1.msra.mxu0 0.0
        %457 = vmatprep.subr.mxu0 0.0
        %458 = vmatpush1.msra.mxu0 0.0
        %459 = vmatprep.subr.mxu0 0.0
        %460 = vmatpush1.msra.mxu0 0.0
        %461 = vmatprep.subr.mxu0 0.0
        %462 = vmatpush1.msra.mxu0 0.0
        %463 = vmatprep.subr.mxu0 0.0
        %464 = vmatpush1.msra.mxu0 0.0
        %465 = vmatprep.subr.mxu0 0.0
        %466 = vmatpush1.msra.mxu0 0.0
        %467 = vmatprep.subr.mxu0 0.0
        %468 = vmatpush1.msra.mxu0 0.0
        %469 = vmatprep.subr.mxu0 0.0
        %470 = vmatpush1.msra.mxu0 0.0
        %471 = vmatprep.subr.mxu0 0.0
        %472 = vmatpush1.msra.mxu0 0.0
        %473 = vmatprep.subr.mxu0 0.0
        %474 = vmatpush1.msra.mxu0 0.0
        %475 = vmatprep.subr.mxu0 0.0
        %476 = vmatpush1.msra.mxu0 0.0
        %477 = vmatprep.subr.mxu0 0.0
        %478 = vmatpush1.msra.mxu0 0.0
        %479 = vmatprep.subr.mxu0 0.0
        %480 = vmatpush1.msra.mxu0 0.0
        %481 = vmatprep.subr.mxu0 0.0
        %482 = vmatpush1.msra.mxu0 0.0
        %483 = vmatprep.subr.mxu0 0.0
        %484 = vmatpush1.msra.mxu0 0.0
        %485 = vmatprep.subr.mxu0 0.0
        %486 = vmatpush1.msra.mxu0 0.0
        %487 = vmatprep.subr.mxu0 0.0
        %488 = vmatpush1.msra.mxu0 0.0
        %489 = vmatprep.subr.mxu0 0.0
        %490 = vmatpush1.msra.mxu0 0.0
        %491 = vmatprep.subr.mxu0 0.0
        %492 = vmatpush1.msra.mxu0 0.0
        %493 = vmatprep.subr.mxu0 0.0
        %494 = vmatpush1.msra.mxu0 0.0
        %495 = vmatprep.subr.mxu0 0.0
        %496 = vmatpush1.msra.mxu0 0.0
        %497 = vmatprep.subr.mxu0 0.0
        %498 = vmatpush1.msra.mxu0 0.0
        %499 = vmatprep.subr.mxu0 0.0
        %500 = vmatpush1.msra.mxu0 0.0
        %501 = vmatprep.subr.mxu0 0.0
        %502 = vmatpush1.msra.mxu0 0.0
        %503 = vmatprep.subr.mxu0 0.0
        %504 = vmatpush1.msra.mxu0 0.0
        %505 = vmatprep.subr.mxu0 0.0
        %506 = vmatpush1.msra.mxu0 0.0
        %507 = vmatprep.subr.mxu0 0.0
        %508 = vmatpush1.msra.mxu0 0.0
        %509 = vmatprep.subr.mxu0 0.0
        %510 = vmatpush1.msra.mxu0 0.0
        %511 = vmatprep.subr.mxu0 0.0
        %512 = vmatpush1.msra.mxu0 0.0
        %513 = vmatprep.subr.mxu0 0.0
        %514 = vmatpush1.msra.mxu0 0.0
        %515 = vmatprep.mubr.f32.mxu0 0.0
        %516 = vmatmul.mubr.f32.gmra.mrb[0].mxu0 %v293
        %v517 = vpop.f32.mrb[0].mxu0
        %v518 = vadd.f32 %v285, %v517
        %v519 = vpop.f32.mrb[0].mxu0
        %v520 = vadd.f32 %v285, %v519
        %521 = vmatprep.mubr.f32.mxu0 0.0
        %522 = vmatmul.mubr.f32.gmra.mrb[0].mxu0 %v295
        %v523 = vpop.f32.mrb[0].mxu0
        %v524 = vadd.f32 %v290, %v523
        %v525 = vpop.f32.mrb[0].mxu0
        %v526 = vadd.f32 %v290, %v525
        %527 = vdwg.mxu0
        %528 = vmatprep.subr.mxu0 %v271
        %529 = vmatpush1.msra.mxu0 %v270
        %530 = vmatprep.subr.mxu0 0.0
        %531 = vmatpush1.msra.mxu0 0.0
        %532 = vmatprep.subr.mxu0 0.0
        %533 = vmatpush1.msra.mxu0 0.0
        %534 = vmatprep.subr.mxu0 0.0
        %535 = vmatpush1.msra.mxu0 0.0
        %536 = vmatprep.subr.mxu0 0.0
        %537 = vmatpush1.msra.mxu0 0.0
        %538 = vmatprep.subr.mxu0 0.0
        %539 = vmatpush1.msra.mxu0 0.0
        %540 = vmatprep.subr.mxu0 0.0
        %541 = vmatpush1.msra.mxu0 0.0
        %542 = vmatprep.subr.mxu0 0.0
        %543 = vmatpush1.msra.mxu0 0.0
        %544 = vmatprep.subr.mxu0 0.0
        %545 = vmatpush1.msra.mxu0 0.0
        %546 = vmatprep.subr.mxu0 0.0
        %547 = vmatpush1.msra.mxu0 0.0
        %548 = vmatprep.subr.mxu0 0.0
        %549 = vmatpush1.msra.mxu0 0.0
        %550 = vmatprep.subr.mxu0 0.0
        %551 = vmatpush1.msra.mxu0 0.0
        %552 = vmatprep.subr.mxu0 0.0
        %553 = vmatpush1.msra.mxu0 0.0
        %554 = vmatprep.subr.mxu0 0.0
        %555 = vmatpush1.msra.mxu0 0.0
        %556 = vmatprep.subr.mxu0 0.0
        %557 = vmatpush1.msra.mxu0 0.0
        %558 = vmatprep.subr.mxu0 0.0
        %559 = vmatpush1.msra.mxu0 0.0
        %560 = vmatprep.subr.mxu0 0.0
        %561 = vmatpush1.msra.mxu0 0.0
        %562 = vmatprep.subr.mxu0 0.0
        %563 = vmatpush1.msra.mxu0 0.0
        %564 = vmatprep.subr.mxu0 0.0
        %565 = vmatpush1.msra.mxu0 0.0
        %566 = vmatprep.subr.mxu0 0.0
        %567 = vmatpush1.msra.mxu0 0.0
        %568 = vmatprep.subr.mxu0 0.0
        %569 = vmatpush1.msra.mxu0 0.0
        %570 = vmatprep.subr.mxu0 0.0
        %571 = vmatpush1.msra.mxu0 0.0
        %572 = vmatprep.subr.mxu0 0.0
        %573 = vmatpush1.msra.mxu0 0.0
        %574 = vmatprep.subr.mxu0 0.0
        %575 = vmatpush1.msra.mxu0 0.0
        %576 = vmatprep.subr.mxu0 0.0
        %577 = vmatpush1.msra.mxu0 0.0
        %578 = vmatprep.subr.mxu0 0.0
        %579 = vmatpush1.msra.mxu0 0.0
        %580 = vmatprep.subr.mxu0 0.0
        %581 = vmatpush1.msra.mxu0 0.0
        %582 = vmatprep.subr.mxu0 0.0
        %583 = vmatpush1.msra.mxu0 0.0
        %584 = vmatprep.subr.mxu0 0.0
        %585 = vmatpush1.msra.mxu0 0.0
        %586 = vmatprep.subr.mxu0 0.0
        %587 = vmatpush1.msra.mxu0 0.0
        %588 = vmatprep.subr.mxu0 0.0
        %589 = vmatpush1.msra.mxu0 0.0
        %590 = vmatprep.subr.mxu0 0.0
        %591 = vmatpush1.msra.mxu0 0.0
        %592 = vmatprep.mubr.f32.mxu0 0.0
        %593 = vmatmul.mubr.f32.gmra.mrb[0].mxu0 %v293
        %v594 = vpop.f32.mrb[0].mxu0
        %v595 = vadd.f32 %v285, %v594
        %v596 = vpop.f32.mrb[0].mxu0
        %v597 = vadd.f32 %v285, %v596
        %598 = vmatprep.mubr.f32.mxu0 0.0
        %599 = vmatmul.mubr.f32.gmra.mrb[0].mxu0 %v295
        %v600 = vpop.f32.mrb[0].mxu0
        %v601 = vadd.f32 %v290, %v600
        %v602 = vpop.f32.mrb[0].mxu0
        %v603 = vadd.f32 %v290, %v602
        %604 = vdwg.mxu0
        %vm605 = vcmp.ge.f32.partialorder %v364, 0.0
        %vm606 = vcmp.ge.f32.partialorder %v366, 0.0
        %vm607 = vcmp.ge.f32.partialorder %v441, 0.0
        %vm608 = vcmp.ge.f32.partialorder %v443, 0.0
        %vm609 = vcmp.ge.f32.partialorder %v518, 0.0
        %vm610 = vcmp.ge.f32.partialorder %v520, 0.0
        %vm611 = vcmp.ge.f32.partialorder %v595, 0.0
        %vm612 = vcmp.ge.f32.partialorder %v597, 0.0
        %vm613 = vcmp.ge.f32.partialorder %v370, 0.0
        %vm614 = vcmp.ge.f32.partialorder %v372, 0.0
        %vm615 = vcmp.ge.f32.partialorder %v447, 0.0
        %vm616 = vcmp.ge.f32.partialorder %v449, 0.0
        %vm617 = vcmp.ge.f32.partialorder %v524, 0.0
        %vm618 = vcmp.ge.f32.partialorder %v526, 0.0
        %vm619 = vcmp.ge.f32.partialorder %v601, 0.0
        %vm620 = vcmp.ge.f32.partialorder %v603, 0.0
        %v621 = vmul.f32 %v364, 0.01
        %v622 = vmul.f32 %v366, 0.01
        %v623 = vmul.f32 %v441, 0.01
        %v624 = vmul.f32 %v443, 0.01
        %v625 = vmul.f32 %v518, 0.01
        %v626 = vmul.f32 %v520, 0.01
        %v627 = vmul.f32 %v595, 0.01
        %v628 = vmul.f32 %v597, 0.01
        %v629 = vmul.f32 %v370, 0.01
        %v630 = vmul.f32 %v372, 0.01
        %v631 = vmul.f32 %v447, 0.01
        %v632 = vmul.f32 %v449, 0.01
        %v633 = vmul.f32 %v524, 0.01
        %v634 = vmul.f32 %v526, 0.01
        %v635 = vmul.f32 %v601, 0.01
        %v636 = vmul.f32 %v603, 0.01
        %v637 = vsel %vm605, %v364, %v621
        %v638 = vsel %vm606, %v366, %v622
        %v639 = vsel %vm607, %v441, %v623
        %v640 = vsel %vm608, %v443, %v624
        %v641 = vsel %vm609, %v518, %v625
        %v642 = vsel %vm610, %v520, %v626
        %v643 = vsel %vm611, %v595, %v627
        %v644 = vsel %vm612, %v597, %v628
        %v645 = vsel %vm613, %v370, %v629
        %v646 = vsel %vm614, %v372, %v630
        %v647 = vsel %vm615, %v447, %v631
        %v648 = vsel %vm616, %v449, %v632
        %v649 = vsel %vm617, %v524, %v633
        %v650 = vsel %vm618, %v526, %v634
        %v651 = vsel %vm619, %v601, %v635
        %v652 = vsel %vm620, %v603, %v636
        %v653 = vld [vmem:[#allocation7 + $0x10] sm:$0xff]
        %655 = vset.pattern.permute.xlu0 24
        %656 = vperm.xlu0 %655, %v653
        %v657 = vpop.permute.xlu0 %656
        %vm659 = vcmask 195584
        %v660 = vsel %vm659, %v653, 0
        %662 = vmatprep.subr.mxu0 %v638
        %663 = vmatpush1.msra.mxu0 %v637
        %664 = vmatprep.subr.mxu0 %v646
        %665 = vmatpush1.msra.mxu0 %v645
        %666 = vmatprep.subr.mxu0 %v265
        %667 = vmatpush1.msra.mxu0 %v264
        %668 = vmatprep.subr.mxu0 0.0
        %669 = vmatpush1.msra.mxu0 0.0
        %670 = vmatprep.subr.mxu0 0.0
        %671 = vmatpush1.msra.mxu0 0.0
        %672 = vmatprep.subr.mxu0 0.0
        %673 = vmatpush1.msra.mxu0 0.0
        %674 = vmatprep.subr.mxu0 0.0
        %675 = vmatpush1.msra.mxu0 0.0
        %676 = vmatprep.subr.mxu0 0.0
        %677 = vmatpush1.msra.mxu0 0.0
        %678 = vmatprep.subr.mxu0 0.0
        %679 = vmatpush1.msra.mxu0 0.0
        %680 = vmatprep.subr.mxu0 0.0
        %681 = vmatpush1.msra.mxu0 0.0
        %682 = vmatprep.subr.mxu0 0.0
        %683 = vmatpush1.msra.mxu0 0.0
        %684 = vmatprep.subr.mxu0 0.0
        %685 = vmatpush1.msra.mxu0 0.0
        %686 = vmatprep.subr.mxu0 0.0
        %687 = vmatpush1.msra.mxu0 0.0
        %688 = vmatprep.subr.mxu0 0.0
        %689 = vmatpush1.msra.mxu0 0.0
        %690 = vmatprep.subr.mxu0 0.0
        %691 = vmatpush1.msra.mxu0 0.0
        %692 = vmatprep.subr.mxu0 0.0
        %693 = vmatpush1.msra.mxu0 0.0
        %694 = vmatprep.subr.mxu0 0.0
        %695 = vmatpush1.msra.mxu0 0.0
        %696 = vmatprep.subr.mxu0 0.0
        %697 = vmatpush1.msra.mxu0 0.0
        %698 = vmatprep.subr.mxu0 0.0
        %699 = vmatpush1.msra.mxu0 0.0
        %700 = vmatprep.subr.mxu0 0.0
        %701 = vmatpush1.msra.mxu0 0.0
        %702 = vmatprep.subr.mxu0 0.0
        %703 = vmatpush1.msra.mxu0 0.0
        %704 = vmatprep.subr.mxu0 0.0
        %705 = vmatpush1.msra.mxu0 0.0
        %706 = vmatprep.subr.mxu0 0.0
        %707 = vmatpush1.msra.mxu0 0.0
        %708 = vmatprep.subr.mxu0 0.0
        %709 = vmatpush1.msra.mxu0 0.0
        %710 = vmatprep.subr.mxu0 0.0
        %711 = vmatpush1.msra.mxu0 0.0
        %712 = vmatprep.subr.mxu0 0.0
        %713 = vmatpush1.msra.mxu0 0.0
        %714 = vmatprep.subr.mxu0 0.0
        %715 = vmatpush1.msra.mxu0 0.0
        %716 = vmatprep.subr.mxu0 0.0
        %717 = vmatpush1.msra.mxu0 0.0
        %718 = vmatprep.subr.mxu0 0.0
        %719 = vmatpush1.msra.mxu0 0.0
        %720 = vmatprep.subr.mxu0 0.0
        %721 = vmatpush1.msra.mxu0 0.0
        %722 = vmatprep.subr.mxu0 0.0
        %723 = vmatpush1.msra.mxu0 0.0
        %724 = vmatprep.subr.mxu0 0.0
        %725 = vmatpush1.msra.mxu0 0.0
        %726 = vmatprep.mubr.f32.mxu0 0.0
        %727 = vmatmul.mubr.f32.gmra.mrb[0].mxu0 %v660
        %v728 = vpop.f32.mrb[0].mxu0
        %v729 = vadd.f32 %v657, %v728
        %v730 = vpop.f32.mrb[0].mxu0
        %v731 = vadd.f32 %v657, %v730
        %732 = vdwg.mxu0
        %733 = vmatprep.subr.mxu0 %v640
        %734 = vmatpush1.msra.mxu0 %v639
        %735 = vmatprep.subr.mxu0 %v648
        %736 = vmatpush1.msra.mxu0 %v647
        %737 = vmatprep.subr.mxu0 %v267
        %738 = vmatpush1.msra.mxu0 %v266
        %739 = vmatprep.subr.mxu0 0.0
        %740 = vmatpush1.msra.mxu0 0.0
        %741 = vmatprep.subr.mxu0 0.0
        %742 = vmatpush1.msra.mxu0 0.0
        %743 = vmatprep.subr.mxu0 0.0
        %744 = vmatpush1.msra.mxu0 0.0
        %745 = vmatprep.subr.mxu0 0.0
        %746 = vmatpush1.msra.mxu0 0.0
        %747 = vmatprep.subr.mxu0 0.0
        %748 = vmatpush1.msra.mxu0 0.0
        %749 = vmatprep.subr.mxu0 0.0
        %750 = vmatpush1.msra.mxu0 0.0
        %751 = vmatprep.subr.mxu0 0.0
        %752 = vmatpush1.msra.mxu0 0.0
        %753 = vmatprep.subr.mxu0 0.0
        %754 = vmatpush1.msra.mxu0 0.0
        %755 = vmatprep.subr.mxu0 0.0
        %756 = vmatpush1.msra.mxu0 0.0
        %757 = vmatprep.subr.mxu0 0.0
        %758 = vmatpush1.msra.mxu0 0.0
        %759 = vmatprep.subr.mxu0 0.0
        %760 = vmatpush1.msra.mxu0 0.0
        %761 = vmatprep.subr.mxu0 0.0
        %762 = vmatpush1.msra.mxu0 0.0
        %763 = vmatprep.subr.mxu0 0.0
        %764 = vmatpush1.msra.mxu0 0.0
        %765 = vmatprep.subr.mxu0 0.0
        %766 = vmatpush1.msra.mxu0 0.0
        %767 = vmatprep.subr.mxu0 0.0
        %768 = vmatpush1.msra.mxu0 0.0
        %769 = vmatprep.subr.mxu0 0.0
        %770 = vmatpush1.msra.mxu0 0.0
        %771 = vmatprep.subr.mxu0 0.0
        %772 = vmatpush1.msra.mxu0 0.0
        %773 = vmatprep.subr.mxu0 0.0
        %774 = vmatpush1.msra.mxu0 0.0
        %775 = vmatprep.subr.mxu0 0.0
        %776 = vmatpush1.msra.mxu0 0.0
        %777 = vmatprep.subr.mxu0 0.0
        %778 = vmatpush1.msra.mxu0 0.0
        %779 = vmatprep.subr.mxu0 0.0
        %780 = vmatpush1.msra.mxu0 0.0
        %781 = vmatprep.subr.mxu0 0.0
        %782 = vmatpush1.msra.mxu0 0.0
        %783 = vmatprep.subr.mxu0 0.0
        %784 = vmatpush1.msra.mxu0 0.0
        %785 = vmatprep.subr.mxu0 0.0
        %786 = vmatpush1.msra.mxu0 0.0
        %787 = vmatprep.subr.mxu0 0.0
        %788 = vmatpush1.msra.mxu0 0.0
        %789 = vmatprep.subr.mxu0 0.0
        %790 = vmatpush1.msra.mxu0 0.0
        %791 = vmatprep.subr.mxu0 0.0
        %792 = vmatpush1.msra.mxu0 0.0
        %793 = vmatprep.subr.mxu0 0.0
        %794 = vmatpush1.msra.mxu0 0.0
        %795 = vmatprep.subr.mxu0 0.0
        %796 = vmatpush1.msra.mxu0 0.0
        %797 = vmatprep.mubr.f32.mxu0 0.0
        %798 = vmatmul.mubr.f32.gmra.mrb[0].mxu0 %v660
        %v799 = vpop.f32.mrb[0].mxu0
        %v800 = vadd.f32 %v657, %v799
        %v801 = vpop.f32.mrb[0].mxu0
        %v802 = vadd.f32 %v657, %v801
        %803 = vdwg.mxu0
        %804 = vmatprep.subr.mxu0 %v642
        %805 = vmatpush1.msra.mxu0 %v641
        %806 = vmatprep.subr.mxu0 %v650
        %807 = vmatpush1.msra.mxu0 %v649
        %808 = vmatprep.subr.mxu0 %v269
        %809 = vmatpush1.msra.mxu0 %v268
        %810 = vmatprep.subr.mxu0 0.0
        %811 = vmatpush1.msra.mxu0 0.0
        %812 = vmatprep.subr.mxu0 0.0
        %813 = vmatpush1.msra.mxu0 0.0
        %814 = vmatprep.subr.mxu0 0.0
        %815 = vmatpush1.msra.mxu0 0.0
        %816 = vmatprep.subr.mxu0 0.0
        %817 = vmatpush1.msra.mxu0 0.0
        %818 = vmatprep.subr.mxu0 0.0
        %819 = vmatpush1.msra.mxu0 0.0
        %820 = vmatprep.subr.mxu0 0.0
        %821 = vmatpush1.msra.mxu0 0.0
        %822 = vmatprep.subr.mxu0 0.0
        %823 = vmatpush1.msra.mxu0 0.0
        %824 = vmatprep.subr.mxu0 0.0
        %825 = vmatpush1.msra.mxu0 0.0
        %826 = vmatprep.subr.mxu0 0.0
        %827 = vmatpush1.msra.mxu0 0.0
        %828 = vmatprep.subr.mxu0 0.0
        %829 = vmatpush1.msra.mxu0 0.0
        %830 = vmatprep.subr.mxu0 0.0
        %831 = vmatpush1.msra.mxu0 0.0
        %832 = vmatprep.subr.mxu0 0.0
        %833 = vmatpush1.msra.mxu0 0.0
        %834 = vmatprep.subr.mxu0 0.0
        %835 = vmatpush1.msra.mxu0 0.0
        %836 = vmatprep.subr.mxu0 0.0
        %837 = vmatpush1.msra.mxu0 0.0
        %838 = vmatprep.subr.mxu0 0.0
        %839 = vmatpush1.msra.mxu0 0.0
        %840 = vmatprep.subr.mxu0 0.0
        %841 = vmatpush1.msra.mxu0 0.0
        %842 = vmatprep.subr.mxu0 0.0
        %843 = vmatpush1.msra.mxu0 0.0
        %844 = vmatprep.subr.mxu0 0.0
        %845 = vmatpush1.msra.mxu0 0.0
        %846 = vmatprep.subr.mxu0 0.0
        %847 = vmatpush1.msra.mxu0 0.0
        %848 = vmatprep.subr.mxu0 0.0
        %849 = vmatpush1.msra.mxu0 0.0
        %850 = vmatprep.subr.mxu0 0.0
        %851 = vmatpush1.msra.mxu0 0.0
        %852 = vmatprep.subr.mxu0 0.0
        %853 = vmatpush1.msra.mxu0 0.0
        %854 = vmatprep.subr.mxu0 0.0
        %855 = vmatpush1.msra.mxu0 0.0
        %856 = vmatprep.subr.mxu0 0.0
        %857 = vmatpush1.msra.mxu0 0.0
        %858 = vmatprep.subr.mxu0 0.0
        %859 = vmatpush1.msra.mxu0 0.0
        %860 = vmatprep.subr.mxu0 0.0
        %861 = vmatpush1.msra.mxu0 0.0
        %862 = vmatprep.subr.mxu0 0.0
        %863 = vmatpush1.msra.mxu0 0.0
        %864 = vmatprep.subr.mxu0 0.0
        %865 = vmatpush1.msra.mxu0 0.0
        %866 = vmatprep.subr.mxu0 0.0
        %867 = vmatpush1.msra.mxu0 0.0
        %868 = vmatprep.mubr.f32.mxu0 0.0
        %869 = vmatmul.mubr.f32.gmra.mrb[0].mxu0 %v660
        %v870 = vpop.f32.mrb[0].mxu0
        %v871 = vadd.f32 %v657, %v870
        %v872 = vpop.f32.mrb[0].mxu0
        %v873 = vadd.f32 %v657, %v872
        %874 = vdwg.mxu0
        %875 = vmatprep.subr.mxu0 %v644
        %876 = vmatpush1.msra.mxu0 %v643
        %877 = vmatprep.subr.mxu0 %v652
        %878 = vmatpush1.msra.mxu0 %v651
        %879 = vmatprep.subr.mxu0 %v271
        %880 = vmatpush1.msra.mxu0 %v270
        %881 = vmatprep.subr.mxu0 0.0
        %882 = vmatpush1.msra.mxu0 0.0
        %883 = vmatprep.subr.mxu0 0.0
        %884 = vmatpush1.msra.mxu0 0.0
        %885 = vmatprep.subr.mxu0 0.0
        %886 = vmatpush1.msra.mxu0 0.0
        %887 = vmatprep.subr.mxu0 0.0
        %888 = vmatpush1.msra.mxu0 0.0
        %889 = vmatprep.subr.mxu0 0.0
        %890 = vmatpush1.msra.mxu0 0.0
        %891 = vmatprep.subr.mxu0 0.0
        %892 = vmatpush1.msra.mxu0 0.0
        %893 = vmatprep.subr.mxu0 0.0
        %894 = vmatpush1.msra.mxu0 0.0
        %895 = vmatprep.subr.mxu0 0.0
        %896 = vmatpush1.msra.mxu0 0.0
        %897 = vmatprep.subr.mxu0 0.0
        %898 = vmatpush1.msra.mxu0 0.0
        %899 = vmatprep.subr.mxu0 0.0
        %900 = vmatpush1.msra.mxu0 0.0
        %901 = vmatprep.subr.mxu0 0.0
        %902 = vmatpush1.msra.mxu0 0.0
        %903 = vmatprep.subr.mxu0 0.0
        %904 = vmatpush1.msra.mxu0 0.0
        %905 = vmatprep.subr.mxu0 0.0
        %906 = vmatpush1.msra.mxu0 0.0
        %907 = vmatprep.subr.mxu0 0.0
        %908 = vmatpush1.msra.mxu0 0.0
        %909 = vmatprep.subr.mxu0 0.0
        %910 = vmatpush1.msra.mxu0 0.0
        %911 = vmatprep.subr.mxu0 0.0
        %912 = vmatpush1.msra.mxu0 0.0
        %913 = vmatprep.subr.mxu0 0.0
        %914 = vmatpush1.msra.mxu0 0.0
        %915 = vmatprep.subr.mxu0 0.0
        %916 = vmatpush1.msra.mxu0 0.0
        %917 = vmatprep.subr.mxu0 0.0
        %918 = vmatpush1.msra.mxu0 0.0
        %919 = vmatprep.subr.mxu0 0.0
        %920 = vmatpush1.msra.mxu0 0.0
        %921 = vmatprep.subr.mxu0 0.0
        %922 = vmatpush1.msra.mxu0 0.0
        %923 = vmatprep.subr.mxu0 0.0
        %924 = vmatpush1.msra.mxu0 0.0
        %925 = vmatprep.subr.mxu0 0.0
        %926 = vmatpush1.msra.mxu0 0.0
        %927 = vmatprep.subr.mxu0 0.0
        %928 = vmatpush1.msra.mxu0 0.0
        %929 = vmatprep.subr.mxu0 0.0
        %930 = vmatpush1.msra.mxu0 0.0
        %931 = vmatprep.subr.mxu0 0.0
        %932 = vmatpush1.msra.mxu0 0.0
        %933 = vmatprep.subr.mxu0 0.0
        %934 = vmatpush1.msra.mxu0 0.0
        %935 = vmatprep.subr.mxu0 0.0
        %936 = vmatpush1.msra.mxu0 0.0
        %937 = vmatprep.subr.mxu0 0.0
        %938 = vmatpush1.msra.mxu0 0.0
        %939 = vmatprep.mubr.f32.mxu0 0.0
        %940 = vmatmul.mubr.f32.gmra.mrb[0].mxu0 %v660
        %v941 = vpop.f32.mrb[0].mxu0
        %v942 = vadd.f32 %v657, %v941
        %v943 = vpop.f32.mrb[0].mxu0
        %v944 = vadd.f32 %v657, %v943
        %945 = vdwg.mxu0
        %vm946 = vcmp.ge.f32.partialorder %v729, 0.0
        %vm947 = vcmp.ge.f32.partialorder %v731, 0.0
        %vm948 = vcmp.ge.f32.partialorder %v800, 0.0
        %vm949 = vcmp.ge.f32.partialorder %v802, 0.0
        %vm950 = vcmp.ge.f32.partialorder %v871, 0.0
        %vm951 = vcmp.ge.f32.partialorder %v873, 0.0
        %vm952 = vcmp.ge.f32.partialorder %v942, 0.0
        %vm953 = vcmp.ge.f32.partialorder %v944, 0.0
        %v954 = vmul.f32 %v729, 0.01
        %v955 = vmul.f32 %v731, 0.01
        %v956 = vmul.f32 %v800, 0.01
        %v957 = vmul.f32 %v802, 0.01
        %v958 = vmul.f32 %v871, 0.01
        %v959 = vmul.f32 %v873, 0.01
        %v960 = vmul.f32 %v942, 0.01
        %v961 = vmul.f32 %v944, 0.01
        %v962 = vsel %vm946, %v729, %v954
        %v963 = vsel %vm947, %v731, %v955
        %v964 = vsel %vm948, %v800, %v956
        %v965 = vsel %vm949, %v802, %v957
        %v966 = vsel %vm950, %v871, %v958
        %v967 = vsel %vm951, %v873, %v959
        %v968 = vsel %vm952, %v942, %v960
        %v969 = vsel %vm953, %v944, %v961
        %v970 = vld [vmem:[#allocation7 + $0x18] sm:$0xff]
        %v971 = vld [vmem:[#allocation7 + $0x20] sm:$0xff]
        %973 = vset.pattern.permute.xlu0 8
        %974 = vperm.xlu0 %973, %v970
        %v975 = vpop.permute.xlu0 %974
        %978 = vset.pattern.permute.xlu0 8
        %979 = vperm.xlu0 %978, %v971
        %v980 = vpop.permute.xlu0 %979
        %v982 = vsel %vm292, %v970, 0
        %v984 = vsel %vm292, %v971, 0
        %986 = vmatprep.subr.mxu0 %v273
        %987 = vmatpush1.msra.mxu0 %v272
        %988 = vmatprep.subr.mxu0 0.0
        %989 = vmatpush1.msra.mxu0 0.0
        %990 = vmatprep.subr.mxu0 0.0
        %991 = vmatpush1.msra.mxu0 0.0
        %992 = vmatprep.subr.mxu0 0.0
        %993 = vmatpush1.msra.mxu0 0.0
        %994 = vmatprep.subr.mxu0 0.0
        %995 = vmatpush1.msra.mxu0 0.0
        %996 = vmatprep.subr.mxu0 0.0
        %997 = vmatpush1.msra.mxu0 0.0
        %998 = vmatprep.subr.mxu0 0.0
        %999 = vmatpush1.msra.mxu0 0.0
        %1000 = vmatprep.subr.mxu0 0.0
        %1001 = vmatpush1.msra.mxu0 0.0
        %1002 = vmatprep.subr.mxu0 0.0
        %1003 = vmatpush1.msra.mxu0 0.0
        %1004 = vmatprep.subr.mxu0 0.0
        %1005 = vmatpush1.msra.mxu0 0.0
        %1006 = vmatprep.subr.mxu0 0.0
        %1007 = vmatpush1.msra.mxu0 0.0
        %1008 = vmatprep.subr.mxu0 0.0
        %1009 = vmatpush1.msra.mxu0 0.0
        %1010 = vmatprep.subr.mxu0 0.0
        %1011 = vmatpush1.msra.mxu0 0.0
        %1012 = vmatprep.subr.mxu0 0.0
        %1013 = vmatpush1.msra.mxu0 0.0
        %1014 = vmatprep.subr.mxu0 0.0
        %1015 = vmatpush1.msra.mxu0 0.0
        %1016 = vmatprep.subr.mxu0 0.0
        %1017 = vmatpush1.msra.mxu0 0.0
        %1018 = vmatprep.subr.mxu0 0.0
        %1019 = vmatpush1.msra.mxu0 0.0
        %1020 = vmatprep.subr.mxu0 0.0
        %1021 = vmatpush1.msra.mxu0 0.0
        %1022 = vmatprep.subr.mxu0 0.0
        %1023 = vmatpush1.msra.mxu0 0.0
        %1024 = vmatprep.subr.mxu0 0.0
        %1025 = vmatpush1.msra.mxu0 0.0
        %1026 = vmatprep.subr.mxu0 0.0
        %1027 = vmatpush1.msra.mxu0 0.0
        %1028 = vmatprep.subr.mxu0 0.0
        %1029 = vmatpush1.msra.mxu0 0.0
        %1030 = vmatprep.subr.mxu0 0.0
        %1031 = vmatpush1.msra.mxu0 0.0
        %1032 = vmatprep.subr.mxu0 0.0
        %1033 = vmatpush1.msra.mxu0 0.0
        %1034 = vmatprep.subr.mxu0 0.0
        %1035 = vmatpush1.msra.mxu0 0.0
        %1036 = vmatprep.subr.mxu0 0.0
        %1037 = vmatpush1.msra.mxu0 0.0
        %1038 = vmatprep.subr.mxu0 0.0
        %1039 = vmatpush1.msra.mxu0 0.0
        %1040 = vmatprep.subr.mxu0 0.0
        %1041 = vmatpush1.msra.mxu0 0.0
        %1042 = vmatprep.subr.mxu0 0.0
        %1043 = vmatpush1.msra.mxu0 0.0
        %1044 = vmatprep.subr.mxu0 0.0
        %1045 = vmatpush1.msra.mxu0 0.0
        %1046 = vmatprep.subr.mxu0 0.0
        %1047 = vmatpush1.msra.mxu0 0.0
        %1048 = vmatprep.subr.mxu0 0.0
        %1049 = vmatpush1.msra.mxu0 0.0
        %1050 = vmatprep.mubr.f32.mxu0 0.0
        %1051 = vmatmul.mubr.f32.gmra.mrb[0].mxu0 %v982
        %v1052 = vpop.f32.mrb[0].mxu0
        %v1053 = vadd.f32 %v975, %v1052
        %v1054 = vpop.f32.mrb[0].mxu0
        %v1055 = vadd.f32 %v975, %v1054
        %1056 = vmatprep.mubr.f32.mxu0 0.0
        %1057 = vmatmul.mubr.f32.gmra.mrb[0].mxu0 %v984
        %v1058 = vpop.f32.mrb[0].mxu0
        %v1059 = vadd.f32 %v980, %v1058
        %v1060 = vpop.f32.mrb[0].mxu0
        %v1061 = vadd.f32 %v980, %v1060
        %1062 = vdwg.mxu0
        %1063 = vmatprep.subr.mxu0 %v275
        %1064 = vmatpush1.msra.mxu0 %v274
        %1065 = vmatprep.subr.mxu0 0.0
        %1066 = vmatpush1.msra.mxu0 0.0
        %1067 = vmatprep.subr.mxu0 0.0
        %1068 = vmatpush1.msra.mxu0 0.0
        %1069 = vmatprep.subr.mxu0 0.0
        %1070 = vmatpush1.msra.mxu0 0.0
        %1071 = vmatprep.subr.mxu0 0.0
        %1072 = vmatpush1.msra.mxu0 0.0
        %1073 = vmatprep.subr.mxu0 0.0
        %1074 = vmatpush1.msra.mxu0 0.0
        %1075 = vmatprep.subr.mxu0 0.0
        %1076 = vmatpush1.msra.mxu0 0.0
        %1077 = vmatprep.subr.mxu0 0.0
        %1078 = vmatpush1.msra.mxu0 0.0
        %1079 = vmatprep.subr.mxu0 0.0
        %1080 = vmatpush1.msra.mxu0 0.0
        %1081 = vmatprep.subr.mxu0 0.0
        %1082 = vmatpush1.msra.mxu0 0.0
        %1083 = vmatprep.subr.mxu0 0.0
        %1084 = vmatpush1.msra.mxu0 0.0
        %1085 = vmatprep.subr.mxu0 0.0
        %1086 = vmatpush1.msra.mxu0 0.0
        %1087 = vmatprep.subr.mxu0 0.0
        %1088 = vmatpush1.msra.mxu0 0.0
        %1089 = vmatprep.subr.mxu0 0.0
        %1090 = vmatpush1.msra.mxu0 0.0
        %1091 = vmatprep.subr.mxu0 0.0
        %1092 = vmatpush1.msra.mxu0 0.0
        %1093 = vmatprep.subr.mxu0 0.0
        %1094 = vmatpush1.msra.mxu0 0.0
        %1095 = vmatprep.subr.mxu0 0.0
        %1096 = vmatpush1.msra.mxu0 0.0
        %1097 = vmatprep.subr.mxu0 0.0
        %1098 = vmatpush1.msra.mxu0 0.0
        %1099 = vmatprep.subr.mxu0 0.0
        %1100 = vmatpush1.msra.mxu0 0.0
        %1101 = vmatprep.subr.mxu0 0.0
        %1102 = vmatpush1.msra.mxu0 0.0
        %1103 = vmatprep.subr.mxu0 0.0
        %1104 = vmatpush1.msra.mxu0 0.0
        %1105 = vmatprep.subr.mxu0 0.0
        %1106 = vmatpush1.msra.mxu0 0.0
        %1107 = vmatprep.subr.mxu0 0.0
        %1108 = vmatpush1.msra.mxu0 0.0
        %1109 = vmatprep.subr.mxu0 0.0
        %1110 = vmatpush1.msra.mxu0 0.0
        %1111 = vmatprep.subr.mxu0 0.0
        %1112 = vmatpush1.msra.mxu0 0.0
        %1113 = vmatprep.subr.mxu0 0.0
        %1114 = vmatpush1.msra.mxu0 0.0
        %1115 = vmatprep.subr.mxu0 0.0
        %1116 = vmatpush1.msra.mxu0 0.0
        %1117 = vmatprep.subr.mxu0 0.0
        %1118 = vmatpush1.msra.mxu0 0.0
        %1119 = vmatprep.subr.mxu0 0.0
        %1120 = vmatpush1.msra.mxu0 0.0
        %1121 = vmatprep.subr.mxu0 0.0
        %1122 = vmatpush1.msra.mxu0 0.0
        %1123 = vmatprep.subr.mxu0 0.0
        %1124 = vmatpush1.msra.mxu0 0.0
        %1125 = vmatprep.subr.mxu0 0.0
        %1126 = vmatpush1.msra.mxu0 0.0
        %1127 = vmatprep.mubr.f32.mxu0 0.0
        %1128 = vmatmul.mubr.f32.gmra.mrb[0].mxu0 %v982
        %v1129 = vpop.f32.mrb[0].mxu0
        %v1130 = vadd.f32 %v975, %v1129
        %v1131 = vpop.f32.mrb[0].mxu0
        %v1132 = vadd.f32 %v975, %v1131
        %1133 = vmatprep.mubr.f32.mxu0 0.0
        %1134 = vmatmul.mubr.f32.gmra.mrb[0].mxu0 %v984
        %v1135 = vpop.f32.mrb[0].mxu0
        %v1136 = vadd.f32 %v980, %v1135
        %v1137 = vpop.f32.mrb[0].mxu0
        %v1138 = vadd.f32 %v980, %v1137
        %1139 = vdwg.mxu0
        %1140 = vmatprep.subr.mxu0 %v277
        %1141 = vmatpush1.msra.mxu0 %v276
        %1142 = vmatprep.subr.mxu0 0.0
        %1143 = vmatpush1.msra.mxu0 0.0
        %1144 = vmatprep.subr.mxu0 0.0
        %1145 = vmatpush1.msra.mxu0 0.0
        %1146 = vmatprep.subr.mxu0 0.0
        %1147 = vmatpush1.msra.mxu0 0.0
        %1148 = vmatprep.subr.mxu0 0.0
        %1149 = vmatpush1.msra.mxu0 0.0
        %1150 = vmatprep.subr.mxu0 0.0
        %1151 = vmatpush1.msra.mxu0 0.0
        %1152 = vmatprep.subr.mxu0 0.0
        %1153 = vmatpush1.msra.mxu0 0.0
        %1154 = vmatprep.subr.mxu0 0.0
        %1155 = vmatpush1.msra.mxu0 0.0
        %1156 = vmatprep.subr.mxu0 0.0
        %1157 = vmatpush1.msra.mxu0 0.0
        %1158 = vmatprep.subr.mxu0 0.0
        %1159 = vmatpush1.msra.mxu0 0.0
        %1160 = vmatprep.subr.mxu0 0.0
        %1161 = vmatpush1.msra.mxu0 0.0
        %1162 = vmatprep.subr.mxu0 0.0
        %1163 = vmatpush1.msra.mxu0 0.0
        %1164 = vmatprep.subr.mxu0 0.0
        %1165 = vmatpush1.msra.mxu0 0.0
        %1166 = vmatprep.subr.mxu0 0.0
        %1167 = vmatpush1.msra.mxu0 0.0
        %1168 = vmatprep.subr.mxu0 0.0
        %1169 = vmatpush1.msra.mxu0 0.0
        %1170 = vmatprep.subr.mxu0 0.0
        %1171 = vmatpush1.msra.mxu0 0.0
        %1172 = vmatprep.subr.mxu0 0.0
        %1173 = vmatpush1.msra.mxu0 0.0
        %1174 = vmatprep.subr.mxu0 0.0
        %1175 = vmatpush1.msra.mxu0 0.0
        %1176 = vmatprep.subr.mxu0 0.0
        %1177 = vmatpush1.msra.mxu0 0.0
        %1178 = vmatprep.subr.mxu0 0.0
        %1179 = vmatpush1.msra.mxu0 0.0
        %1180 = vmatprep.subr.mxu0 0.0
        %1181 = vmatpush1.msra.mxu0 0.0
        %1182 = vmatprep.subr.mxu0 0.0
        %1183 = vmatpush1.msra.mxu0 0.0
        %1184 = vmatprep.subr.mxu0 0.0
        %1185 = vmatpush1.msra.mxu0 0.0
        %1186 = vmatprep.subr.mxu0 0.0
        %1187 = vmatpush1.msra.mxu0 0.0
        %1188 = vmatprep.subr.mxu0 0.0
        %1189 = vmatpush1.msra.mxu0 0.0
        %1190 = vmatprep.subr.mxu0 0.0
        %1191 = vmatpush1.msra.mxu0 0.0
        %1192 = vmatprep.subr.mxu0 0.0
        %1193 = vmatpush1.msra.mxu0 0.0
        %1194 = vmatprep.subr.mxu0 0.0
        %1195 = vmatpush1.msra.mxu0 0.0
        %1196 = vmatprep.subr.mxu0 0.0
        %1197 = vmatpush1.msra.mxu0 0.0
        %1198 = vmatprep.subr.mxu0 0.0
        %1199 = vmatpush1.msra.mxu0 0.0
        %1200 = vmatprep.subr.mxu0 0.0
        %1201 = vmatpush1.msra.mxu0 0.0
        %1202 = vmatprep.subr.mxu0 0.0
        %1203 = vmatpush1.msra.mxu0 0.0
        %1204 = vmatprep.mubr.f32.mxu0 0.0
        %1205 = vmatmul.mubr.f32.gmra.mrb[0].mxu0 %v982
        %v1206 = vpop.f32.mrb[0].mxu0
        %v1207 = vadd.f32 %v975, %v1206
        %v1208 = vpop.f32.mrb[0].mxu0
        %v1209 = vadd.f32 %v975, %v1208
        %1210 = vmatprep.mubr.f32.mxu0 0.0
        %1211 = vmatmul.mubr.f32.gmra.mrb[0].mxu0 %v984
        %v1212 = vpop.f32.mrb[0].mxu0
        %v1213 = vadd.f32 %v980, %v1212
        %v1214 = vpop.f32.mrb[0].mxu0
        %v1215 = vadd.f32 %v980, %v1214
        %1216 = vdwg.mxu0
        %1217 = vmatprep.subr.mxu0 %v279
        %1218 = vmatpush1.msra.mxu0 %v278
        %1219 = vmatprep.subr.mxu0 0.0
        %1220 = vmatpush1.msra.mxu0 0.0
        %1221 = vmatprep.subr.mxu0 0.0
        %1222 = vmatpush1.msra.mxu0 0.0
        %1223 = vmatprep.subr.mxu0 0.0
        %1224 = vmatpush1.msra.mxu0 0.0
        %1225 = vmatprep.subr.mxu0 0.0
        %1226 = vmatpush1.msra.mxu0 0.0
        %1227 = vmatprep.subr.mxu0 0.0
        %1228 = vmatpush1.msra.mxu0 0.0
        %1229 = vmatprep.subr.mxu0 0.0
        %1230 = vmatpush1.msra.mxu0 0.0
        %1231 = vmatprep.subr.mxu0 0.0
        %1232 = vmatpush1.msra.mxu0 0.0
        %1233 = vmatprep.subr.mxu0 0.0
        %1234 = vmatpush1.msra.mxu0 0.0
        %1235 = vmatprep.subr.mxu0 0.0
        %1236 = vmatpush1.msra.mxu0 0.0
        %1237 = vmatprep.subr.mxu0 0.0
        %1238 = vmatpush1.msra.mxu0 0.0
        %1239 = vmatprep.subr.mxu0 0.0
        %1240 = vmatpush1.msra.mxu0 0.0
        %1241 = vmatprep.subr.mxu0 0.0
        %1242 = vmatpush1.msra.mxu0 0.0
        %1243 = vmatprep.subr.mxu0 0.0
        %1244 = vmatpush1.msra.mxu0 0.0
        %1245 = vmatprep.subr.mxu0 0.0
        %1246 = vmatpush1.msra.mxu0 0.0
        %1247 = vmatprep.subr.mxu0 0.0
        %1248 = vmatpush1.msra.mxu0 0.0
        %1249 = vmatprep.subr.mxu0 0.0
        %1250 = vmatpush1.msra.mxu0 0.0
        %1251 = vmatprep.subr.mxu0 0.0
        %1252 = vmatpush1.msra.mxu0 0.0
        %1253 = vmatprep.subr.mxu0 0.0
        %1254 = vmatpush1.msra.mxu0 0.0
        %1255 = vmatprep.subr.mxu0 0.0
        %1256 = vmatpush1.msra.mxu0 0.0
        %1257 = vmatprep.subr.mxu0 0.0
        %1258 = vmatpush1.msra.mxu0 0.0
        %1259 = vmatprep.subr.mxu0 0.0
        %1260 = vmatpush1.msra.mxu0 0.0
        %1261 = vmatprep.subr.mxu0 0.0
        %1262 = vmatpush1.msra.mxu0 0.0
        %1263 = vmatprep.subr.mxu0 0.0
        %1264 = vmatpush1.msra.mxu0 0.0
        %1265 = vmatprep.subr.mxu0 0.0
        %1266 = vmatpush1.msra.mxu0 0.0
        %1267 = vmatprep.subr.mxu0 0.0
        %1268 = vmatpush1.msra.mxu0 0.0
        %1269 = vmatprep.subr.mxu0 0.0
        %1270 = vmatpush1.msra.mxu0 0.0
        %1271 = vmatprep.subr.mxu0 0.0
        %1272 = vmatpush1.msra.mxu0 0.0
        %1273 = vmatprep.subr.mxu0 0.0
        %1274 = vmatpush1.msra.mxu0 0.0
        %1275 = vmatprep.subr.mxu0 0.0
        %1276 = vmatpush1.msra.mxu0 0.0
        %1277 = vmatprep.subr.mxu0 0.0
        %1278 = vmatpush1.msra.mxu0 0.0
        %1279 = vmatprep.subr.mxu0 0.0
        %1280 = vmatpush1.msra.mxu0 0.0
        %1281 = vmatprep.mubr.f32.mxu0 0.0
        %1282 = vmatmul.mubr.f32.gmra.mrb[0].mxu0 %v982
        %v1283 = vpop.f32.mrb[0].mxu0
        %v1284 = vadd.f32 %v975, %v1283
        %v1285 = vpop.f32.mrb[0].mxu0
        %v1286 = vadd.f32 %v975, %v1285
        %1287 = vmatprep.mubr.f32.mxu0 0.0
        %1288 = vmatmul.mubr.f32.gmra.mrb[0].mxu0 %v984
        %v1289 = vpop.f32.mrb[0].mxu0
        %v1290 = vadd.f32 %v980, %v1289
        %v1291 = vpop.f32.mrb[0].mxu0
        %v1292 = vadd.f32 %v980, %v1291
        %1293 = vdwg.mxu0
        %vm1294 = vcmp.ge.f32.partialorder %v1053, 0.0
        %vm1295 = vcmp.ge.f32.partialorder %v1055, 0.0
        %vm1296 = vcmp.ge.f32.partialorder %v1130, 0.0
        %vm1297 = vcmp.ge.f32.partialorder %v1132, 0.0
        %vm1298 = vcmp.ge.f32.partialorder %v1207, 0.0
        %vm1299 = vcmp.ge.f32.partialorder %v1209, 0.0
        %vm1300 = vcmp.ge.f32.partialorder %v1284, 0.0
        %vm1301 = vcmp.ge.f32.partialorder %v1286, 0.0
        %vm1302 = vcmp.ge.f32.partialorder %v1059, 0.0
        %vm1303 = vcmp.ge.f32.partialorder %v1061, 0.0
        %vm1304 = vcmp.ge.f32.partialorder %v1136, 0.0
        %vm1305 = vcmp.ge.f32.partialorder %v1138, 0.0
        %vm1306 = vcmp.ge.f32.partialorder %v1213, 0.0
        %vm1307 = vcmp.ge.f32.partialorder %v1215, 0.0
        %vm1308 = vcmp.ge.f32.partialorder %v1290, 0.0
        %vm1309 = vcmp.ge.f32.partialorder %v1292, 0.0
        %v1310 = vmul.f32 %v1053, 0.01
        %v1311 = vmul.f32 %v1055, 0.01
        %v1312 = vmul.f32 %v1130, 0.01
        %v1313 = vmul.f32 %v1132, 0.01
        %v1314 = vmul.f32 %v1207, 0.01
        %v1315 = vmul.f32 %v1209, 0.01
        %v1316 = vmul.f32 %v1284, 0.01
        %v1317 = vmul.f32 %v1286, 0.01
        %v1318 = vmul.f32 %v1059, 0.01
        %v1319 = vmul.f32 %v1061, 0.01
        %v1320 = vmul.f32 %v1136, 0.01
        %v1321 = vmul.f32 %v1138, 0.01
        %v1322 = vmul.f32 %v1213, 0.01
        %v1323 = vmul.f32 %v1215, 0.01
        %v1324 = vmul.f32 %v1290, 0.01
        %v1325 = vmul.f32 %v1292, 0.01
        %v1326 = vsel %vm1294, %v1053, %v1310
        %v1327 = vsel %vm1295, %v1055, %v1311
        %v1328 = vsel %vm1296, %v1130, %v1312
        %v1329 = vsel %vm1297, %v1132, %v1313
        %v1330 = vsel %vm1298, %v1207, %v1314
        %v1331 = vsel %vm1299, %v1209, %v1315
        %v1332 = vsel %vm1300, %v1284, %v1316
        %v1333 = vsel %vm1301, %v1286, %v1317
        %v1334 = vsel %vm1302, %v1059, %v1318
        %v1335 = vsel %vm1303, %v1061, %v1319
        %v1336 = vsel %vm1304, %v1136, %v1320
        %v1337 = vsel %vm1305, %v1138, %v1321
        %v1338 = vsel %vm1306, %v1213, %v1322
        %v1339 = vsel %vm1307, %v1215, %v1323
        %v1340 = vsel %vm1308, %v1290, %v1324
        %v1341 = vsel %vm1309, %v1292, %v1325
        %v1342 = vld [vmem:[#allocation7 + $0x28] sm:$0xff]
        %1344 = vset.pattern.permute.xlu0 24
        %1345 = vperm.xlu0 %1344, %v1342
        %v1346 = vpop.permute.xlu0 %1345
        %v1348 = vsel %vm659, %v1342, 0
        %1350 = vmatprep.subr.mxu0 %v1327
        %1351 = vmatpush1.msra.mxu0 %v1326
        %1352 = vmatprep.subr.mxu0 %v1335
        %1353 = vmatpush1.msra.mxu0 %v1334
        %1354 = vmatprep.subr.mxu0 %v273
        %1355 = vmatpush1.msra.mxu0 %v272
        %1356 = vmatprep.subr.mxu0 0.0
        %1357 = vmatpush1.msra.mxu0 0.0
        %1358 = vmatprep.subr.mxu0 0.0
        %1359 = vmatpush1.msra.mxu0 0.0
        %1360 = vmatprep.subr.mxu0 0.0
        %1361 = vmatpush1.msra.mxu0 0.0
        %1362 = vmatprep.subr.mxu0 0.0
        %1363 = vmatpush1.msra.mxu0 0.0
        %1364 = vmatprep.subr.mxu0 0.0
        %1365 = vmatpush1.msra.mxu0 0.0
        %1366 = vmatprep.subr.mxu0 0.0
        %1367 = vmatpush1.msra.mxu0 0.0
        %1368 = vmatprep.subr.mxu0 0.0
        %1369 = vmatpush1.msra.mxu0 0.0
        %1370 = vmatprep.subr.mxu0 0.0
        %1371 = vmatpush1.msra.mxu0 0.0
        %1372 = vmatprep.subr.mxu0 0.0
        %1373 = vmatpush1.msra.mxu0 0.0
        %1374 = vmatprep.subr.mxu0 0.0
        %1375 = vmatpush1.msra.mxu0 0.0
        %1376 = vmatprep.subr.mxu0 0.0
        %1377 = vmatpush1.msra.mxu0 0.0
        %1378 = vmatprep.subr.mxu0 0.0
        %1379 = vmatpush1.msra.mxu0 0.0
        %1380 = vmatprep.subr.mxu0 0.0
        %1381 = vmatpush1.msra.mxu0 0.0
        %1382 = vmatprep.subr.mxu0 0.0
        %1383 = vmatpush1.msra.mxu0 0.0
        %1384 = vmatprep.subr.mxu0 0.0
        %1385 = vmatpush1.msra.mxu0 0.0
        %1386 = vmatprep.subr.mxu0 0.0
        %1387 = vmatpush1.msra.mxu0 0.0
        %1388 = vmatprep.subr.mxu0 0.0
        %1389 = vmatpush1.msra.mxu0 0.0
        %1390 = vmatprep.subr.mxu0 0.0
        %1391 = vmatpush1.msra.mxu0 0.0
        %1392 = vmatprep.subr.mxu0 0.0
        %1393 = vmatpush1.msra.mxu0 0.0
        %1394 = vmatprep.subr.mxu0 0.0
        %1395 = vmatpush1.msra.mxu0 0.0
        %1396 = vmatprep.subr.mxu0 0.0
        %1397 = vmatpush1.msra.mxu0 0.0
        %1398 = vmatprep.subr.mxu0 0.0
        %1399 = vmatpush1.msra.mxu0 0.0
        %1400 = vmatprep.subr.mxu0 0.0
        %1401 = vmatpush1.msra.mxu0 0.0
        %1402 = vmatprep.subr.mxu0 0.0
        %1403 = vmatpush1.msra.mxu0 0.0
        %1404 = vmatprep.subr.mxu0 0.0
        %1405 = vmatpush1.msra.mxu0 0.0
        %1406 = vmatprep.subr.mxu0 0.0
        %1407 = vmatpush1.msra.mxu0 0.0
        %1408 = vmatprep.subr.mxu0 0.0
        %1409 = vmatpush1.msra.mxu0 0.0
        %1410 = vmatprep.subr.mxu0 0.0
        %1411 = vmatpush1.msra.mxu0 0.0
        %1412 = vmatprep.subr.mxu0 0.0
        %1413 = vmatpush1.msra.mxu0 0.0
        %1414 = vmatprep.mubr.f32.mxu0 0.0
        %1415 = vmatmul.mubr.f32.gmra.mrb[0].mxu0 %v1348
        %v1416 = vpop.f32.mrb[0].mxu0
        %v1417 = vadd.f32 %v1346, %v1416
        %v1418 = vpop.f32.mrb[0].mxu0
        %v1419 = vadd.f32 %v1346, %v1418
        %1420 = vdwg.mxu0
        %1421 = vmatprep.subr.mxu0 %v1329
        %1422 = vmatpush1.msra.mxu0 %v1328
        %1423 = vmatprep.subr.mxu0 %v1337
        %1424 = vmatpush1.msra.mxu0 %v1336
        %1425 = vmatprep.subr.mxu0 %v275
        %1426 = vmatpush1.msra.mxu0 %v274
        %1427 = vmatprep.subr.mxu0 0.0
        %1428 = vmatpush1.msra.mxu0 0.0
        %1429 = vmatprep.subr.mxu0 0.0
        %1430 = vmatpush1.msra.mxu0 0.0
        %1431 = vmatprep.subr.mxu0 0.0
        %1432 = vmatpush1.msra.mxu0 0.0
        %1433 = vmatprep.subr.mxu0 0.0
        %1434 = vmatpush1.msra.mxu0 0.0
        %1435 = vmatprep.subr.mxu0 0.0
        %1436 = vmatpush1.msra.mxu0 0.0
        %1437 = vmatprep.subr.mxu0 0.0
        %1438 = vmatpush1.msra.mxu0 0.0
        %1439 = vmatprep.subr.mxu0 0.0
        %1440 = vmatpush1.msra.mxu0 0.0
        %1441 = vmatprep.subr.mxu0 0.0
        %1442 = vmatpush1.msra.mxu0 0.0
        %1443 = vmatprep.subr.mxu0 0.0
        %1444 = vmatpush1.msra.mxu0 0.0
        %1445 = vmatprep.subr.mxu0 0.0
        %1446 = vmatpush1.msra.mxu0 0.0
        %1447 = vmatprep.subr.mxu0 0.0
        %1448 = vmatpush1.msra.mxu0 0.0
        %1449 = vmatprep.subr.mxu0 0.0
        %1450 = vmatpush1.msra.mxu0 0.0
        %1451 = vmatprep.subr.mxu0 0.0
        %1452 = vmatpush1.msra.mxu0 0.0
        %1453 = vmatprep.subr.mxu0 0.0
        %1454 = vmatpush1.msra.mxu0 0.0
        %1455 = vmatprep.subr.mxu0 0.0
        %1456 = vmatpush1.msra.mxu0 0.0
        %1457 = vmatprep.subr.mxu0 0.0
        %1458 = vmatpush1.msra.mxu0 0.0
        %1459 = vmatprep.subr.mxu0 0.0
        %1460 = vmatpush1.msra.mxu0 0.0
        %1461 = vmatprep.subr.mxu0 0.0
        %1462 = vmatpush1.msra.mxu0 0.0
        %1463 = vmatprep.subr.mxu0 0.0
        %1464 = vmatpush1.msra.mxu0 0.0
        %1465 = vmatprep.subr.mxu0 0.0
        %1466 = vmatpush1.msra.mxu0 0.0
        %1467 = vmatprep.subr.mxu0 0.0
        %1468 = vmatpush1.msra.mxu0 0.0
        %1469 = vmatprep.subr.mxu0 0.0
        %1470 = vmatpush1.msra.mxu0 0.0
        %1471 = vmatprep.subr.mxu0 0.0
        %1472 = vmatpush1.msra.mxu0 0.0
        %1473 = vmatprep.subr.mxu0 0.0
        %1474 = vmatpush1.msra.mxu0 0.0
        %1475 = vmatprep.subr.mxu0 0.0
        %1476 = vmatpush1.msra.mxu0 0.0
        %1477 = vmatprep.subr.mxu0 0.0
        %1478 = vmatpush1.msra.mxu0 0.0
        %1479 = vmatprep.subr.mxu0 0.0
        %1480 = vmatpush1.msra.mxu0 0.0
        %1481 = vmatprep.subr.mxu0 0.0
        %1482 = vmatpush1.msra.mxu0 0.0
        %1483 = vmatprep.subr.mxu0 0.0
        %1484 = vmatpush1.msra.mxu0 0.0
        %1485 = vmatprep.mubr.f32.mxu0 0.0
        %1486 = vmatmul.mubr.f32.gmra.mrb[0].mxu0 %v1348
        %v1487 = vpop.f32.mrb[0].mxu0
        %v1488 = vadd.f32 %v1346, %v1487
        %v1489 = vpop.f32.mrb[0].mxu0
        %v1490 = vadd.f32 %v1346, %v1489
        %1491 = vdwg.mxu0
        %1492 = vmatprep.subr.mxu0 %v1331
        %1493 = vmatpush1.msra.mxu0 %v1330
        %1494 = vmatprep.subr.mxu0 %v1339
        %1495 = vmatpush1.msra.mxu0 %v1338
        %1496 = vmatprep.subr.mxu0 %v277
        %1497 = vmatpush1.msra.mxu0 %v276
        %1498 = vmatprep.subr.mxu0 0.0
        %1499 = vmatpush1.msra.mxu0 0.0
        %1500 = vmatprep.subr.mxu0 0.0
        %1501 = vmatpush1.msra.mxu0 0.0
        %1502 = vmatprep.subr.mxu0 0.0
        %1503 = vmatpush1.msra.mxu0 0.0
        %1504 = vmatprep.subr.mxu0 0.0
        %1505 = vmatpush1.msra.mxu0 0.0
        %1506 = vmatprep.subr.mxu0 0.0
        %1507 = vmatpush1.msra.mxu0 0.0
        %1508 = vmatprep.subr.mxu0 0.0
        %1509 = vmatpush1.msra.mxu0 0.0
        %1510 = vmatprep.subr.mxu0 0.0
        %1511 = vmatpush1.msra.mxu0 0.0
        %1512 = vmatprep.subr.mxu0 0.0
        %1513 = vmatpush1.msra.mxu0 0.0
        %1514 = vmatprep.subr.mxu0 0.0
        %1515 = vmatpush1.msra.mxu0 0.0
        %1516 = vmatprep.subr.mxu0 0.0
        %1517 = vmatpush1.msra.mxu0 0.0
        %1518 = vmatprep.subr.mxu0 0.0
        %1519 = vmatpush1.msra.mxu0 0.0
        %1520 = vmatprep.subr.mxu0 0.0
        %1521 = vmatpush1.msra.mxu0 0.0
        %1522 = vmatprep.subr.mxu0 0.0
        %1523 = vmatpush1.msra.mxu0 0.0
        %1524 = vmatprep.subr.mxu0 0.0
        %1525 = vmatpush1.msra.mxu0 0.0
        %1526 = vmatprep.subr.mxu0 0.0
        %1527 = vmatpush1.msra.mxu0 0.0
        %1528 = vmatprep.subr.mxu0 0.0
        %1529 = vmatpush1.msra.mxu0 0.0
        %1530 = vmatprep.subr.mxu0 0.0
        %1531 = vmatpush1.msra.mxu0 0.0
        %1532 = vmatprep.subr.mxu0 0.0
        %1533 = vmatpush1.msra.mxu0 0.0
        %1534 = vmatprep.subr.mxu0 0.0
        %1535 = vmatpush1.msra.mxu0 0.0
        %1536 = vmatprep.subr.mxu0 0.0
        %1537 = vmatpush1.msra.mxu0 0.0
        %1538 = vmatprep.subr.mxu0 0.0
        %1539 = vmatpush1.msra.mxu0 0.0
        %1540 = vmatprep.subr.mxu0 0.0
        %1541 = vmatpush1.msra.mxu0 0.0
        %1542 = vmatprep.subr.mxu0 0.0
        %1543 = vmatpush1.msra.mxu0 0.0
        %1544 = vmatprep.subr.mxu0 0.0
        %1545 = vmatpush1.msra.mxu0 0.0
        %1546 = vmatprep.subr.mxu0 0.0
        %1547 = vmatpush1.msra.mxu0 0.0
        %1548 = vmatprep.subr.mxu0 0.0
        %1549 = vmatpush1.msra.mxu0 0.0
        %1550 = vmatprep.subr.mxu0 0.0
        %1551 = vmatpush1.msra.mxu0 0.0
        %1552 = vmatprep.subr.mxu0 0.0
        %1553 = vmatpush1.msra.mxu0 0.0
        %1554 = vmatprep.subr.mxu0 0.0
        %1555 = vmatpush1.msra.mxu0 0.0
        %1556 = vmatprep.mubr.f32.mxu0 0.0
        %1557 = vmatmul.mubr.f32.gmra.mrb[0].mxu0 %v1348
        %v1558 = vpop.f32.mrb[0].mxu0
        %v1559 = vadd.f32 %v1346, %v1558
        %v1560 = vpop.f32.mrb[0].mxu0
        %v1561 = vadd.f32 %v1346, %v1560
        %1562 = vdwg.mxu0
        %1563 = vmatprep.subr.mxu0 %v1333
        %1564 = vmatpush1.msra.mxu0 %v1332
        %1565 = vmatprep.subr.mxu0 %v1341
        %1566 = vmatpush1.msra.mxu0 %v1340
        %1567 = vmatprep.subr.mxu0 %v279
        %1568 = vmatpush1.msra.mxu0 %v278
        %1569 = vmatprep.subr.mxu0 0.0
        %1570 = vmatpush1.msra.mxu0 0.0
        %1571 = vmatprep.subr.mxu0 0.0
        %1572 = vmatpush1.msra.mxu0 0.0
        %1573 = vmatprep.subr.mxu0 0.0
        %1574 = vmatpush1.msra.mxu0 0.0
        %1575 = vmatprep.subr.mxu0 0.0
        %1576 = vmatpush1.msra.mxu0 0.0
        %1577 = vmatprep.subr.mxu0 0.0
        %1578 = vmatpush1.msra.mxu0 0.0
        %1579 = vmatprep.subr.mxu0 0.0
        %1580 = vmatpush1.msra.mxu0 0.0
        %1581 = vmatprep.subr.mxu0 0.0
        %1582 = vmatpush1.msra.mxu0 0.0
        %1583 = vmatprep.subr.mxu0 0.0
        %1584 = vmatpush1.msra.mxu0 0.0
        %1585 = vmatprep.subr.mxu0 0.0
        %1586 = vmatpush1.msra.mxu0 0.0
        %1587 = vmatprep.subr.mxu0 0.0
        %1588 = vmatpush1.msra.mxu0 0.0
        %1589 = vmatprep.subr.mxu0 0.0
        %1590 = vmatpush1.msra.mxu0 0.0
        %1591 = vmatprep.subr.mxu0 0.0
        %1592 = vmatpush1.msra.mxu0 0.0
        %1593 = vmatprep.subr.mxu0 0.0
        %1594 = vmatpush1.msra.mxu0 0.0
        %1595 = vmatprep.subr.mxu0 0.0
        %1596 = vmatpush1.msra.mxu0 0.0
        %1597 = vmatprep.subr.mxu0 0.0
        %1598 = vmatpush1.msra.mxu0 0.0
        %1599 = vmatprep.subr.mxu0 0.0
        %1600 = vmatpush1.msra.mxu0 0.0
        %1601 = vmatprep.subr.mxu0 0.0
        %1602 = vmatpush1.msra.mxu0 0.0
        %1603 = vmatprep.subr.mxu0 0.0
        %1604 = vmatpush1.msra.mxu0 0.0
        %1605 = vmatprep.subr.mxu0 0.0
        %1606 = vmatpush1.msra.mxu0 0.0
        %1607 = vmatprep.subr.mxu0 0.0
        %1608 = vmatpush1.msra.mxu0 0.0
        %1609 = vmatprep.subr.mxu0 0.0
        %1610 = vmatpush1.msra.mxu0 0.0
        %1611 = vmatprep.subr.mxu0 0.0
        %1612 = vmatpush1.msra.mxu0 0.0
        %1613 = vmatprep.subr.mxu0 0.0
        %1614 = vmatpush1.msra.mxu0 0.0
        %1615 = vmatprep.subr.mxu0 0.0
        %1616 = vmatpush1.msra.mxu0 0.0
        %1617 = vmatprep.subr.mxu0 0.0
        %1618 = vmatpush1.msra.mxu0 0.0
        %1619 = vmatprep.subr.mxu0 0.0
        %1620 = vmatpush1.msra.mxu0 0.0
        %1621 = vmatprep.subr.mxu0 0.0
        %1622 = vmatpush1.msra.mxu0 0.0
        %1623 = vmatprep.subr.mxu0 0.0
        %1624 = vmatpush1.msra.mxu0 0.0
        %1625 = vmatprep.subr.mxu0 0.0
        %1626 = vmatpush1.msra.mxu0 0.0
        %1627 = vmatprep.mubr.f32.mxu0 0.0
        %1628 = vmatmul.mubr.f32.gmra.mrb[0].mxu0 %v1348
        %v1629 = vpop.f32.mrb[0].mxu0
        %v1630 = vadd.f32 %v1346, %v1629
        %v1631 = vpop.f32.mrb[0].mxu0
        %v1632 = vadd.f32 %v1346, %v1631
        %1633 = vdwg.mxu0
        %vm1634 = vcmp.ge.f32.partialorder %v1417, 0.0
        %vm1635 = vcmp.ge.f32.partialorder %v1419, 0.0
        %vm1636 = vcmp.ge.f32.partialorder %v1488, 0.0
        %vm1637 = vcmp.ge.f32.partialorder %v1490, 0.0
        %vm1638 = vcmp.ge.f32.partialorder %v1559, 0.0
        %vm1639 = vcmp.ge.f32.partialorder %v1561, 0.0
        %vm1640 = vcmp.ge.f32.partialorder %v1630, 0.0
        %vm1641 = vcmp.ge.f32.partialorder %v1632, 0.0
        %v1642 = vmul.f32 %v1417, 0.01
        %v1643 = vmul.f32 %v1419, 0.01
        %v1644 = vmul.f32 %v1488, 0.01
        %v1645 = vmul.f32 %v1490, 0.01
        %v1646 = vmul.f32 %v1559, 0.01
        %v1647 = vmul.f32 %v1561, 0.01
        %v1648 = vmul.f32 %v1630, 0.01
        %v1649 = vmul.f32 %v1632, 0.01
        %v1650 = vsel %vm1634, %v1417, %v1642
        %v1651 = vsel %vm1635, %v1419, %v1643
        %v1652 = vsel %vm1636, %v1488, %v1644
        %v1653 = vsel %vm1637, %v1490, %v1645
        %v1654 = vsel %vm1638, %v1559, %v1646
        %v1655 = vsel %vm1639, %v1561, %v1647
        %v1656 = vsel %vm1640, %v1630, %v1648
        %v1657 = vsel %vm1641, %v1632, %v1649
        %v1658 = vld [vmem:[#allocation7 + $0x30] sm:$0xff]
        %v1659 = vld [vmem:[#allocation7 + $0x38] sm:$0xff]
        %1661 = vset.pattern.permute.xlu0 32
        %1662 = vperm.xlu0 %1661, %v1658
        %v1663 = vpop.permute.xlu0 %1662
        %1666 = vset.pattern.permute.xlu0 32
        %1667 = vperm.xlu0 %1666, %v1659
        %v1668 = vpop.permute.xlu0 %1667
        %vm1670 = vcmask 261120
        %v1671 = vsel %vm1670, %v1658, 0
        %v1673 = vsel %vm1670, %v1659, 0
        %1675 = vmatprep.subr.mxu0 %v963
        %1676 = vmatpush1.msra.mxu0 %v962
        %1677 = vmatprep.subr.mxu0 %v1651
        %1678 = vmatpush1.msra.mxu0 %v1650
        %1679 = vmatprep.subr.mxu0 %v265
        %1680 = vmatpush1.msra.mxu0 %v264
        %1681 = vmatprep.subr.mxu0 %v273
        %1682 = vmatpush1.msra.mxu0 %v272
        %1683 = vmatprep.subr.mxu0 0.0
        %1684 = vmatpush1.msra.mxu0 0.0
        %1685 = vmatprep.subr.mxu0 0.0
        %1686 = vmatpush1.msra.mxu0 0.0
        %1687 = vmatprep.subr.mxu0 0.0
        %1688 = vmatpush1.msra.mxu0 0.0
        %1689 = vmatprep.subr.mxu0 0.0
        %1690 = vmatpush1.msra.mxu0 0.0
        %1691 = vmatprep.subr.mxu0 0.0
        %1692 = vmatpush1.msra.mxu0 0.0
        %1693 = vmatprep.subr.mxu0 0.0
        %1694 = vmatpush1.msra.mxu0 0.0
        %1695 = vmatprep.subr.mxu0 0.0
        %1696 = vmatpush1.msra.mxu0 0.0
        %1697 = vmatprep.subr.mxu0 0.0
        %1698 = vmatpush1.msra.mxu0 0.0
        %1699 = vmatprep.subr.mxu0 0.0
        %1700 = vmatpush1.msra.mxu0 0.0
        %1701 = vmatprep.subr.mxu0 0.0
        %1702 = vmatpush1.msra.mxu0 0.0
        %1703 = vmatprep.subr.mxu0 0.0
        %1704 = vmatpush1.msra.mxu0 0.0
        %1705 = vmatprep.subr.mxu0 0.0
        %1706 = vmatpush1.msra.mxu0 0.0
        %1707 = vmatprep.subr.mxu0 0.0
        %1708 = vmatpush1.msra.mxu0 0.0
        %1709 = vmatprep.subr.mxu0 0.0
        %1710 = vmatpush1.msra.mxu0 0.0
        %1711 = vmatprep.subr.mxu0 0.0
        %1712 = vmatpush1.msra.mxu0 0.0
        %1713 = vmatprep.subr.mxu0 0.0
        %1714 = vmatpush1.msra.mxu0 0.0
        %1715 = vmatprep.subr.mxu0 0.0
        %1716 = vmatpush1.msra.mxu0 0.0
        %1717 = vmatprep.subr.mxu0 0.0
        %1718 = vmatpush1.msra.mxu0 0.0
        %1719 = vmatprep.subr.mxu0 0.0
        %1720 = vmatpush1.msra.mxu0 0.0
        %1721 = vmatprep.subr.mxu0 0.0
        %1722 = vmatpush1.msra.mxu0 0.0
        %1723 = vmatprep.subr.mxu0 0.0
        %1724 = vmatpush1.msra.mxu0 0.0
        %1725 = vmatprep.subr.mxu0 0.0
        %1726 = vmatpush1.msra.mxu0 0.0
        %1727 = vmatprep.subr.mxu0 0.0
        %1728 = vmatpush1.msra.mxu0 0.0
        %1729 = vmatprep.subr.mxu0 0.0
        %1730 = vmatpush1.msra.mxu0 0.0
        %1731 = vmatprep.subr.mxu0 0.0
        %1732 = vmatpush1.msra.mxu0 0.0
        %1733 = vmatprep.subr.mxu0 0.0
        %1734 = vmatpush1.msra.mxu0 0.0
        %1735 = vmatprep.subr.mxu0 0.0
        %1736 = vmatpush1.msra.mxu0 0.0
        %1737 = vmatprep.subr.mxu0 0.0
        %1738 = vmatpush1.msra.mxu0 0.0
        %1739 = vmatprep.mubr.f32.mxu0 0.0
        %1740 = vmatmul.mubr.f32.gmra.mrb[0].mxu0 %v1671
        %v1741 = vpop.f32.mrb[0].mxu0
        %v1742 = vadd.f32 %v1663, %v1741
        %v1743 = vpop.f32.mrb[0].mxu0
        %v1744 = vadd.f32 %v1663, %v1743
        %1745 = vmatprep.mubr.f32.mxu0 0.0
        %1746 = vmatmul.mubr.f32.gmra.mrb[0].mxu0 %v1673
        %v1747 = vpop.f32.mrb[0].mxu0
        %v1748 = vadd.f32 %v1668, %v1747
        %v1749 = vpop.f32.mrb[0].mxu0
        %v1750 = vadd.f32 %v1668, %v1749
        %1751 = vdwg.mxu0
        %1752 = vmatprep.subr.mxu0 %v965
        %1753 = vmatpush1.msra.mxu0 %v964
        %1754 = vmatprep.subr.mxu0 %v1653
        %1755 = vmatpush1.msra.mxu0 %v1652
        %1756 = vmatprep.subr.mxu0 %v267
        %1757 = vmatpush1.msra.mxu0 %v266
        %1758 = vmatprep.subr.mxu0 %v275
        %1759 = vmatpush1.msra.mxu0 %v274
        %1760 = vmatprep.subr.mxu0 0.0
        %1761 = vmatpush1.msra.mxu0 0.0
        %1762 = vmatprep.subr.mxu0 0.0
        %1763 = vmatpush1.msra.mxu0 0.0
        %1764 = vmatprep.subr.mxu0 0.0
        %1765 = vmatpush1.msra.mxu0 0.0
        %1766 = vmatprep.subr.mxu0 0.0
        %1767 = vmatpush1.msra.mxu0 0.0
        %1768 = vmatprep.subr.mxu0 0.0
        %1769 = vmatpush1.msra.mxu0 0.0
        %1770 = vmatprep.subr.mxu0 0.0
        %1771 = vmatpush1.msra.mxu0 0.0
        %1772 = vmatprep.subr.mxu0 0.0
        %1773 = vmatpush1.msra.mxu0 0.0
        %1774 = vmatprep.subr.mxu0 0.0
        %1775 = vmatpush1.msra.mxu0 0.0
        %1776 = vmatprep.subr.mxu0 0.0
        %1777 = vmatpush1.msra.mxu0 0.0
        %1778 = vmatprep.subr.mxu0 0.0
        %1779 = vmatpush1.msra.mxu0 0.0
        %1780 = vmatprep.subr.mxu0 0.0
        %1781 = vmatpush1.msra.mxu0 0.0
        %1782 = vmatprep.subr.mxu0 0.0
        %1783 = vmatpush1.msra.mxu0 0.0
        %1784 = vmatprep.subr.mxu0 0.0
        %1785 = vmatpush1.msra.mxu0 0.0
        %1786 = vmatprep.subr.mxu0 0.0
        %1787 = vmatpush1.msra.mxu0 0.0
        %1788 = vmatprep.subr.mxu0 0.0
        %1789 = vmatpush1.msra.mxu0 0.0
        %1790 = vmatprep.subr.mxu0 0.0
        %1791 = vmatpush1.msra.mxu0 0.0
        %1792 = vmatprep.subr.mxu0 0.0
        %1793 = vmatpush1.msra.mxu0 0.0
        %1794 = vmatprep.subr.mxu0 0.0
        %1795 = vmatpush1.msra.mxu0 0.0
        %1796 = vmatprep.subr.mxu0 0.0
        %1797 = vmatpush1.msra.mxu0 0.0
        %1798 = vmatprep.subr.mxu0 0.0
        %1799 = vmatpush1.msra.mxu0 0.0
        %1800 = vmatprep.subr.mxu0 0.0
        %1801 = vmatpush1.msra.mxu0 0.0
        %1802 = vmatprep.subr.mxu0 0.0
        %1803 = vmatpush1.msra.mxu0 0.0
        %1804 = vmatprep.subr.mxu0 0.0
        %1805 = vmatpush1.msra.mxu0 0.0
        %1806 = vmatprep.subr.mxu0 0.0
        %1807 = vmatpush1.msra.mxu0 0.0
        %1808 = vmatprep.subr.mxu0 0.0
        %1809 = vmatpush1.msra.mxu0 0.0
        %1810 = vmatprep.subr.mxu0 0.0
        %1811 = vmatpush1.msra.mxu0 0.0
        %1812 = vmatprep.subr.mxu0 0.0
        %1813 = vmatpush1.msra.mxu0 0.0
        %1814 = vmatprep.subr.mxu0 0.0
        %1815 = vmatpush1.msra.mxu0 0.0
        %1816 = vmatprep.mubr.f32.mxu0 0.0
        %1817 = vmatmul.mubr.f32.gmra.mrb[0].mxu0 %v1671
        %v1818 = vpop.f32.mrb[0].mxu0
        %v1819 = vadd.f32 %v1663, %v1818
        %v1820 = vpop.f32.mrb[0].mxu0
        %v1821 = vadd.f32 %v1663, %v1820
        %1822 = vmatprep.mubr.f32.mxu0 0.0
        %1823 = vmatmul.mubr.f32.gmra.mrb[0].mxu0 %v1673
        %v1824 = vpop.f32.mrb[0].mxu0
        %v1825 = vadd.f32 %v1668, %v1824
        %v1826 = vpop.f32.mrb[0].mxu0
        %v1827 = vadd.f32 %v1668, %v1826
        %1828 = vdwg.mxu0
        %1829 = vmatprep.subr.mxu0 %v967
        %1830 = vmatpush1.msra.mxu0 %v966
        %1831 = vmatprep.subr.mxu0 %v1655
        %1832 = vmatpush1.msra.mxu0 %v1654
        %1833 = vmatprep.subr.mxu0 %v269
        %1834 = vmatpush1.msra.mxu0 %v268
        %1835 = vmatprep.subr.mxu0 %v277
        %1836 = vmatpush1.msra.mxu0 %v276
        %1837 = vmatprep.subr.mxu0 0.0
        %1838 = vmatpush1.msra.mxu0 0.0
        %1839 = vmatprep.subr.mxu0 0.0
        %1840 = vmatpush1.msra.mxu0 0.0
        %1841 = vmatprep.subr.mxu0 0.0
        %1842 = vmatpush1.msra.mxu0 0.0
        %1843 = vmatprep.subr.mxu0 0.0
        %1844 = vmatpush1.msra.mxu0 0.0
        %1845 = vmatprep.subr.mxu0 0.0
        %1846 = vmatpush1.msra.mxu0 0.0
        %1847 = vmatprep.subr.mxu0 0.0
        %1848 = vmatpush1.msra.mxu0 0.0
        %1849 = vmatprep.subr.mxu0 0.0
        %1850 = vmatpush1.msra.mxu0 0.0
        %1851 = vmatprep.subr.mxu0 0.0
        %1852 = vmatpush1.msra.mxu0 0.0
        %1853 = vmatprep.subr.mxu0 0.0
        %1854 = vmatpush1.msra.mxu0 0.0
        %1855 = vmatprep.subr.mxu0 0.0
        %1856 = vmatpush1.msra.mxu0 0.0
        %1857 = vmatprep.subr.mxu0 0.0
        %1858 = vmatpush1.msra.mxu0 0.0
        %1859 = vmatprep.subr.mxu0 0.0
        %1860 = vmatpush1.msra.mxu0 0.0
        %1861 = vmatprep.subr.mxu0 0.0
        %1862 = vmatpush1.msra.mxu0 0.0
        %1863 = vmatprep.subr.mxu0 0.0
        %1864 = vmatpush1.msra.mxu0 0.0
        %1865 = vmatprep.subr.mxu0 0.0
        %1866 = vmatpush1.msra.mxu0 0.0
        %1867 = vmatprep.subr.mxu0 0.0
        %1868 = vmatpush1.msra.mxu0 0.0
        %1869 = vmatprep.subr.mxu0 0.0
        %1870 = vmatpush1.msra.mxu0 0.0
        %1871 = vmatprep.subr.mxu0 0.0
        %1872 = vmatpush1.msra.mxu0 0.0
        %1873 = vmatprep.subr.mxu0 0.0
        %1874 = vmatpush1.msra.mxu0 0.0
        %1875 = vmatprep.subr.mxu0 0.0
        %1876 = vmatpush1.msra.mxu0 0.0
        %1877 = vmatprep.subr.mxu0 0.0
        %1878 = vmatpush1.msra.mxu0 0.0
        %1879 = vmatprep.subr.mxu0 0.0
        %1880 = vmatpush1.msra.mxu0 0.0
        %1881 = vmatprep.subr.mxu0 0.0
        %1882 = vmatpush1.msra.mxu0 0.0
        %1883 = vmatprep.subr.mxu0 0.0
        %1884 = vmatpush1.msra.mxu0 0.0
        %1885 = vmatprep.subr.mxu0 0.0
        %1886 = vmatpush1.msra.mxu0 0.0
        %1887 = vmatprep.subr.mxu0 0.0
        %1888 = vmatpush1.msra.mxu0 0.0
        %1889 = vmatprep.subr.mxu0 0.0
        %1890 = vmatpush1.msra.mxu0 0.0
        %1891 = vmatprep.subr.mxu0 0.0
        %1892 = vmatpush1.msra.mxu0 0.0
        %1893 = vmatprep.mubr.f32.mxu0 0.0
        %1894 = vmatmul.mubr.f32.gmra.mrb[0].mxu0 %v1671
        %v1895 = vpop.f32.mrb[0].mxu0
        %v1896 = vadd.f32 %v1663, %v1895
        %v1897 = vpop.f32.mrb[0].mxu0
        %v1898 = vadd.f32 %v1663, %v1897
        %1899 = vmatprep.mubr.f32.mxu0 0.0
        %1900 = vmatmul.mubr.f32.gmra.mrb[0].mxu0 %v1673
        %v1901 = vpop.f32.mrb[0].mxu0
        %v1902 = vadd.f32 %v1668, %v1901
        %v1903 = vpop.f32.mrb[0].mxu0
        %v1904 = vadd.f32 %v1668, %v1903
        %1905 = vdwg.mxu0
        %1906 = vmatprep.subr.mxu0 %v969
        %1907 = vmatpush1.msra.mxu0 %v968
        %1908 = vmatprep.subr.mxu0 %v1657
        %1909 = vmatpush1.msra.mxu0 %v1656
        %1910 = vmatprep.subr.mxu0 %v271
        %1911 = vmatpush1.msra.mxu0 %v270
        %1912 = vmatprep.subr.mxu0 %v279
        %1913 = vmatpush1.msra.mxu0 %v278
        %1914 = vmatprep.subr.mxu0 0.0
        %1915 = vmatpush1.msra.mxu0 0.0
        %1916 = vmatprep.subr.mxu0 0.0
        %1917 = vmatpush1.msra.mxu0 0.0
        %1918 = vmatprep.subr.mxu0 0.0
        %1919 = vmatpush1.msra.mxu0 0.0
        %1920 = vmatprep.subr.mxu0 0.0
        %1921 = vmatpush1.msra.mxu0 0.0
        %1922 = vmatprep.subr.mxu0 0.0
        %1923 = vmatpush1.msra.mxu0 0.0
        %1924 = vmatprep.subr.mxu0 0.0
        %1925 = vmatpush1.msra.mxu0 0.0
        %1926 = vmatprep.subr.mxu0 0.0
        %1927 = vmatpush1.msra.mxu0 0.0
        %1928 = vmatprep.subr.mxu0 0.0
        %1929 = vmatpush1.msra.mxu0 0.0
        %1930 = vmatprep.subr.mxu0 0.0
        %1931 = vmatpush1.msra.mxu0 0.0
        %1932 = vmatprep.subr.mxu0 0.0
        %1933 = vmatpush1.msra.mxu0 0.0
        %1934 = vmatprep.subr.mxu0 0.0
        %1935 = vmatpush1.msra.mxu0 0.0
        %1936 = vmatprep.subr.mxu0 0.0
        %1937 = vmatpush1.msra.mxu0 0.0
        %1938 = vmatprep.subr.mxu0 0.0
        %1939 = vmatpush1.msra.mxu0 0.0
        %1940 = vmatprep.subr.mxu0 0.0
        %1941 = vmatpush1.msra.mxu0 0.0
        %1942 = vmatprep.subr.mxu0 0.0
        %1943 = vmatpush1.msra.mxu0 0.0
        %1944 = vmatprep.subr.mxu0 0.0
        %1945 = vmatpush1.msra.mxu0 0.0
        %1946 = vmatprep.subr.mxu0 0.0
        %1947 = vmatpush1.msra.mxu0 0.0
        %1948 = vmatprep.subr.mxu0 0.0
        %1949 = vmatpush1.msra.mxu0 0.0
        %1950 = vmatprep.subr.mxu0 0.0
        %1951 = vmatpush1.msra.mxu0 0.0
        %1952 = vmatprep.subr.mxu0 0.0
        %1953 = vmatpush1.msra.mxu0 0.0
        %1954 = vmatprep.subr.mxu0 0.0
        %1955 = vmatpush1.msra.mxu0 0.0
        %1956 = vmatprep.subr.mxu0 0.0
        %1957 = vmatpush1.msra.mxu0 0.0
        %1958 = vmatprep.subr.mxu0 0.0
        %1959 = vmatpush1.msra.mxu0 0.0
        %1960 = vmatprep.subr.mxu0 0.0
        %1961 = vmatpush1.msra.mxu0 0.0
        %1962 = vmatprep.subr.mxu0 0.0
        %1963 = vmatpush1.msra.mxu0 0.0
        %1964 = vmatprep.subr.mxu0 0.0
        %1965 = vmatpush1.msra.mxu0 0.0
        %1966 = vmatprep.subr.mxu0 0.0
        %1967 = vmatpush1.msra.mxu0 0.0
        %1968 = vmatprep.subr.mxu0 0.0
        %1969 = vmatpush1.msra.mxu0 0.0
        %1970 = vmatprep.mubr.f32.mxu0 0.0
        %1971 = vmatmul.mubr.f32.gmra.mrb[0].mxu0 %v1671
        %v1972 = vpop.f32.mrb[0].mxu0
        %v1973 = vadd.f32 %v1663, %v1972
        %v1974 = vpop.f32.mrb[0].mxu0
        %v1975 = vadd.f32 %v1663, %v1974
        %1976 = vmatprep.mubr.f32.mxu0 0.0
        %1977 = vmatmul.mubr.f32.gmra.mrb[0].mxu0 %v1673
        %v1978 = vpop.f32.mrb[0].mxu0
        %v1979 = vadd.f32 %v1668, %v1978
        %v1980 = vpop.f32.mrb[0].mxu0
        %v1981 = vadd.f32 %v1668, %v1980
        %1982 = vdwg.mxu0
        %vm1983 = vcmp.ge.f32.partialorder %v1742, 0.0
        %vm1984 = vcmp.ge.f32.partialorder %v1744, 0.0
        %vm1985 = vcmp.ge.f32.partialorder %v1819, 0.0
        %vm1986 = vcmp.ge.f32.partialorder %v1821, 0.0
        %vm1987 = vcmp.ge.f32.partialorder %v1896, 0.0
        %vm1988 = vcmp.ge.f32.partialorder %v1898, 0.0
        %vm1989 = vcmp.ge.f32.partialorder %v1973, 0.0
        %vm1990 = vcmp.ge.f32.partialorder %v1975, 0.0
        %vm1991 = vcmp.ge.f32.partialorder %v1748, 0.0
        %vm1992 = vcmp.ge.f32.partialorder %v1750, 0.0
        %vm1993 = vcmp.ge.f32.partialorder %v1825, 0.0
        %vm1994 = vcmp.ge.f32.partialorder %v1827, 0.0
        %vm1995 = vcmp.ge.f32.partialorder %v1902, 0.0
        %vm1996 = vcmp.ge.f32.partialorder %v1904, 0.0
        %vm1997 = vcmp.ge.f32.partialorder %v1979, 0.0
        %vm1998 = vcmp.ge.f32.partialorder %v1981, 0.0
        %v1999 = vmul.f32 %v1742, 0.01
        %v2000 = vmul.f32 %v1744, 0.01
        %v2001 = vmul.f32 %v1819, 0.01
        %v2002 = vmul.f32 %v1821, 0.01
        %v2003 = vmul.f32 %v1896, 0.01
        %v2004 = vmul.f32 %v1898, 0.01
        %v2005 = vmul.f32 %v1973, 0.01
        %v2006 = vmul.f32 %v1975, 0.01
        %v2007 = vmul.f32 %v1748, 0.01
        %v2008 = vmul.f32 %v1750, 0.01
        %v2009 = vmul.f32 %v1825, 0.01
        %v2010 = vmul.f32 %v1827, 0.01
        %v2011 = vmul.f32 %v1902, 0.01
        %v2012 = vmul.f32 %v1904, 0.01
        %v2013 = vmul.f32 %v1979, 0.01
        %v2014 = vmul.f32 %v1981, 0.01
        %v2015 = vsel %vm1983, %v1742, %v1999
        %v2016 = vsel %vm1984, %v1744, %v2000
        %v2017 = vsel %vm1985, %v1819, %v2001
        %v2018 = vsel %vm1986, %v1821, %v2002
        %v2019 = vsel %vm1987, %v1896, %v2003
        %v2020 = vsel %vm1988, %v1898, %v2004
        %v2021 = vsel %vm1989, %v1973, %v2005
        %v2022 = vsel %vm1990, %v1975, %v2006
        %v2023 = vsel %vm1991, %v1748, %v2007
        %v2024 = vsel %vm1992, %v1750, %v2008
        %v2025 = vsel %vm1993, %v1825, %v2009
        %v2026 = vsel %vm1994, %v1827, %v2010
        %v2027 = vsel %vm1995, %v1902, %v2011
        %v2028 = vsel %vm1996, %v1904, %v2012
        %v2029 = vsel %vm1997, %v1979, %v2013
        %v2030 = vsel %vm1998, %v1981, %v2014
        %v2031 = vld [vmem:[#allocation7 + $0x40] sm:$0xff]
        %2033 = vset.pattern.permute.xlu0 32
        %2034 = vperm.xlu0 %2033, %v2031
        %v2035 = vpop.permute.xlu0 %2034
        %v2037 = vsel %vm1670, %v2031, 0
        %2039 = vmatprep.subr.mxu0 %v2016
        %2040 = vmatpush1.msra.mxu0 %v2015
        %2041 = vmatprep.subr.mxu0 %v2024
        %2042 = vmatpush1.msra.mxu0 %v2023
        %2043 = vmatprep.subr.mxu0 %v265
        %2044 = vmatpush1.msra.mxu0 %v264
        %2045 = vmatprep.subr.mxu0 %v273
        %2046 = vmatpush1.msra.mxu0 %v272
        %2047 = vmatprep.subr.mxu0 0.0
        %2048 = vmatpush1.msra.mxu0 0.0
        %2049 = vmatprep.subr.mxu0 0.0
        %2050 = vmatpush1.msra.mxu0 0.0
        %2051 = vmatprep.subr.mxu0 0.0
        %2052 = vmatpush1.msra.mxu0 0.0
        %2053 = vmatprep.subr.mxu0 0.0
        %2054 = vmatpush1.msra.mxu0 0.0
        %2055 = vmatprep.subr.mxu0 0.0
        %2056 = vmatpush1.msra.mxu0 0.0
        %2057 = vmatprep.subr.mxu0 0.0
        %2058 = vmatpush1.msra.mxu0 0.0
        %2059 = vmatprep.subr.mxu0 0.0
        %2060 = vmatpush1.msra.mxu0 0.0
        %2061 = vmatprep.subr.mxu0 0.0
        %2062 = vmatpush1.msra.mxu0 0.0
        %2063 = vmatprep.subr.mxu0 0.0
        %2064 = vmatpush1.msra.mxu0 0.0
        %2065 = vmatprep.subr.mxu0 0.0
        %2066 = vmatpush1.msra.mxu0 0.0
        %2067 = vmatprep.subr.mxu0 0.0
        %2068 = vmatpush1.msra.mxu0 0.0
        %2069 = vmatprep.subr.mxu0 0.0
        %2070 = vmatpush1.msra.mxu0 0.0
        %2071 = vmatprep.subr.mxu0 0.0
        %2072 = vmatpush1.msra.mxu0 0.0
        %2073 = vmatprep.subr.mxu0 0.0
        %2074 = vmatpush1.msra.mxu0 0.0
        %2075 = vmatprep.subr.mxu0 0.0
        %2076 = vmatpush1.msra.mxu0 0.0
        %2077 = vmatprep.subr.mxu0 0.0
        %2078 = vmatpush1.msra.mxu0 0.0
        %2079 = vmatprep.subr.mxu0 0.0
        %2080 = vmatpush1.msra.mxu0 0.0
        %2081 = vmatprep.subr.mxu0 0.0
        %2082 = vmatpush1.msra.mxu0 0.0
        %2083 = vmatprep.subr.mxu0 0.0
        %2084 = vmatpush1.msra.mxu0 0.0
        %2085 = vmatprep.subr.mxu0 0.0
        %2086 = vmatpush1.msra.mxu0 0.0
        %2087 = vmatprep.subr.mxu0 0.0
        %2088 = vmatpush1.msra.mxu0 0.0
        %2089 = vmatprep.subr.mxu0 0.0
        %2090 = vmatpush1.msra.mxu0 0.0
        %2091 = vmatprep.subr.mxu0 0.0
        %2092 = vmatpush1.msra.mxu0 0.0
        %2093 = vmatprep.subr.mxu0 0.0
        %2094 = vmatpush1.msra.mxu0 0.0
        %2095 = vmatprep.subr.mxu0 0.0
        %2096 = vmatpush1.msra.mxu0 0.0
        %2097 = vmatprep.subr.mxu0 0.0
        %2098 = vmatpush1.msra.mxu0 0.0
        %2099 = vmatprep.subr.mxu0 0.0
        %2100 = vmatpush1.msra.mxu0 0.0
        %2101 = vmatprep.subr.mxu0 0.0
        %2102 = vmatpush1.msra.mxu0 0.0
        %2103 = vmatprep.mubr.f32.mxu0 0.0
        %2104 = vmatmul.mubr.f32.gmra.mrb[0].mxu0 %v2037
        %v2105 = vpop.f32.mrb[0].mxu0
        %v2106 = vadd.f32 %v2035, %v2105
        %v2107 = vpop.f32.mrb[0].mxu0
        %v2108 = vadd.f32 %v2035, %v2107
        %2109 = vdwg.mxu0
        %2110 = vmatprep.subr.mxu0 %v2018
        %2111 = vmatpush1.msra.mxu0 %v2017
        %2112 = vmatprep.subr.mxu0 %v2026
        %2113 = vmatpush1.msra.mxu0 %v2025
        %2114 = vmatprep.subr.mxu0 %v267
        %2115 = vmatpush1.msra.mxu0 %v266
        %2116 = vmatprep.subr.mxu0 %v275
        %2117 = vmatpush1.msra.mxu0 %v274
        %2118 = vmatprep.subr.mxu0 0.0
        %2119 = vmatpush1.msra.mxu0 0.0
        %2120 = vmatprep.subr.mxu0 0.0
        %2121 = vmatpush1.msra.mxu0 0.0
        %2122 = vmatprep.subr.mxu0 0.0
        %2123 = vmatpush1.msra.mxu0 0.0
        %2124 = vmatprep.subr.mxu0 0.0
        %2125 = vmatpush1.msra.mxu0 0.0
        %2126 = vmatprep.subr.mxu0 0.0
        %2127 = vmatpush1.msra.mxu0 0.0
        %2128 = vmatprep.subr.mxu0 0.0
        %2129 = vmatpush1.msra.mxu0 0.0
        %2130 = vmatprep.subr.mxu0 0.0
        %2131 = vmatpush1.msra.mxu0 0.0
        %2132 = vmatprep.subr.mxu0 0.0
        %2133 = vmatpush1.msra.mxu0 0.0
        %2134 = vmatprep.subr.mxu0 0.0
        %2135 = vmatpush1.msra.mxu0 0.0
        %2136 = vmatprep.subr.mxu0 0.0
        %2137 = vmatpush1.msra.mxu0 0.0
        %2138 = vmatprep.subr.mxu0 0.0
        %2139 = vmatpush1.msra.mxu0 0.0
        %2140 = vmatprep.subr.mxu0 0.0
        %2141 = vmatpush1.msra.mxu0 0.0
        %2142 = vmatprep.subr.mxu0 0.0
        %2143 = vmatpush1.msra.mxu0 0.0
        %2144 = vmatprep.subr.mxu0 0.0
        %2145 = vmatpush1.msra.mxu0 0.0
        %2146 = vmatprep.subr.mxu0 0.0
        %2147 = vmatpush1.msra.mxu0 0.0
        %2148 = vmatprep.subr.mxu0 0.0
        %2149 = vmatpush1.msra.mxu0 0.0
        %2150 = vmatprep.subr.mxu0 0.0
        %2151 = vmatpush1.msra.mxu0 0.0
        %2152 = vmatprep.subr.mxu0 0.0
        %2153 = vmatpush1.msra.mxu0 0.0
        %2154 = vmatprep.subr.mxu0 0.0
        %2155 = vmatpush1.msra.mxu0 0.0
        %2156 = vmatprep.subr.mxu0 0.0
        %2157 = vmatpush1.msra.mxu0 0.0
        %2158 = vmatprep.subr.mxu0 0.0
        %2159 = vmatpush1.msra.mxu0 0.0
        %2160 = vmatprep.subr.mxu0 0.0
        %2161 = vmatpush1.msra.mxu0 0.0
        %2162 = vmatprep.subr.mxu0 0.0
        %2163 = vmatpush1.msra.mxu0 0.0
        %2164 = vmatprep.subr.mxu0 0.0
        %2165 = vmatpush1.msra.mxu0 0.0
        %2166 = vmatprep.subr.mxu0 0.0
        %2167 = vmatpush1.msra.mxu0 0.0
        %2168 = vmatprep.subr.mxu0 0.0
        %2169 = vmatpush1.msra.mxu0 0.0
        %2170 = vmatprep.subr.mxu0 0.0
        %2171 = vmatpush1.msra.mxu0 0.0
        %2172 = vmatprep.subr.mxu0 0.0
        %2173 = vmatpush1.msra.mxu0 0.0
        %2174 = vmatprep.mubr.f32.mxu0 0.0
        %2175 = vmatmul.mubr.f32.gmra.mrb[0].mxu0 %v2037
        %v2176 = vpop.f32.mrb[0].mxu0
        %v2177 = vadd.f32 %v2035, %v2176
        %v2178 = vpop.f32.mrb[0].mxu0
        %v2179 = vadd.f32 %v2035, %v2178
        %2180 = vdwg.mxu0
        %2181 = vmatprep.subr.mxu0 %v2020
        %2182 = vmatpush1.msra.mxu0 %v2019
        %2183 = vmatprep.subr.mxu0 %v2028
        %2184 = vmatpush1.msra.mxu0 %v2027
        %2185 = vmatprep.subr.mxu0 %v269
        %2186 = vmatpush1.msra.mxu0 %v268
        %2187 = vmatprep.subr.mxu0 %v277
        %2188 = vmatpush1.msra.mxu0 %v276
        %2189 = vmatprep.subr.mxu0 0.0
        %2190 = vmatpush1.msra.mxu0 0.0
        %2191 = vmatprep.subr.mxu0 0.0
        %2192 = vmatpush1.msra.mxu0 0.0
        %2193 = vmatprep.subr.mxu0 0.0
        %2194 = vmatpush1.msra.mxu0 0.0
        %2195 = vmatprep.subr.mxu0 0.0
        %2196 = vmatpush1.msra.mxu0 0.0
        %2197 = vmatprep.subr.mxu0 0.0
        %2198 = vmatpush1.msra.mxu0 0.0
        %2199 = vmatprep.subr.mxu0 0.0
        %2200 = vmatpush1.msra.mxu0 0.0
        %2201 = vmatprep.subr.mxu0 0.0
        %2202 = vmatpush1.msra.mxu0 0.0
        %2203 = vmatprep.subr.mxu0 0.0
        %2204 = vmatpush1.msra.mxu0 0.0
        %2205 = vmatprep.subr.mxu0 0.0
        %2206 = vmatpush1.msra.mxu0 0.0
        %2207 = vmatprep.subr.mxu0 0.0
        %2208 = vmatpush1.msra.mxu0 0.0
        %2209 = vmatprep.subr.mxu0 0.0
        %2210 = vmatpush1.msra.mxu0 0.0
        %2211 = vmatprep.subr.mxu0 0.0
        %2212 = vmatpush1.msra.mxu0 0.0
        %2213 = vmatprep.subr.mxu0 0.0
        %2214 = vmatpush1.msra.mxu0 0.0
        %2215 = vmatprep.subr.mxu0 0.0
        %2216 = vmatpush1.msra.mxu0 0.0
        %2217 = vmatprep.subr.mxu0 0.0
        %2218 = vmatpush1.msra.mxu0 0.0
        %2219 = vmatprep.subr.mxu0 0.0
        %2220 = vmatpush1.msra.mxu0 0.0
        %2221 = vmatprep.subr.mxu0 0.0
        %2222 = vmatpush1.msra.mxu0 0.0
        %2223 = vmatprep.subr.mxu0 0.0
        %2224 = vmatpush1.msra.mxu0 0.0
        %2225 = vmatprep.subr.mxu0 0.0
        %2226 = vmatpush1.msra.mxu0 0.0
        %2227 = vmatprep.subr.mxu0 0.0
        %2228 = vmatpush1.msra.mxu0 0.0
        %2229 = vmatprep.subr.mxu0 0.0
        %2230 = vmatpush1.msra.mxu0 0.0
        %2231 = vmatprep.subr.mxu0 0.0
        %2232 = vmatpush1.msra.mxu0 0.0
        %2233 = vmatprep.subr.mxu0 0.0
        %2234 = vmatpush1.msra.mxu0 0.0
        %2235 = vmatprep.subr.mxu0 0.0
        %2236 = vmatpush1.msra.mxu0 0.0
        %2237 = vmatprep.subr.mxu0 0.0
        %2238 = vmatpush1.msra.mxu0 0.0
        %2239 = vmatprep.subr.mxu0 0.0
        %2240 = vmatpush1.msra.mxu0 0.0
        %2241 = vmatprep.subr.mxu0 0.0
        %2242 = vmatpush1.msra.mxu0 0.0
        %2243 = vmatprep.subr.mxu0 0.0
        %2244 = vmatpush1.msra.mxu0 0.0
        %2245 = vmatprep.mubr.f32.mxu0 0.0
        %2246 = vmatmul.mubr.f32.gmra.mrb[0].mxu0 %v2037
        %v2247 = vpop.f32.mrb[0].mxu0
        %v2248 = vadd.f32 %v2035, %v2247
        %v2249 = vpop.f32.mrb[0].mxu0
        %v2250 = vadd.f32 %v2035, %v2249
        %2251 = vdwg.mxu0
        %2252 = vmatprep.subr.mxu0 %v2022
        %2253 = vmatpush1.msra.mxu0 %v2021
        %2254 = vmatprep.subr.mxu0 %v2030
        %2255 = vmatpush1.msra.mxu0 %v2029
        %2256 = vmatprep.subr.mxu0 %v271
        %2257 = vmatpush1.msra.mxu0 %v270
        %2258 = vmatprep.subr.mxu0 %v279
        %2259 = vmatpush1.msra.mxu0 %v278
        %2260 = vmatprep.subr.mxu0 0.0
        %2261 = vmatpush1.msra.mxu0 0.0
        %2262 = vmatprep.subr.mxu0 0.0
        %2263 = vmatpush1.msra.mxu0 0.0
        %2264 = vmatprep.subr.mxu0 0.0
        %2265 = vmatpush1.msra.mxu0 0.0
        %2266 = vmatprep.subr.mxu0 0.0
        %2267 = vmatpush1.msra.mxu0 0.0
        %2268 = vmatprep.subr.mxu0 0.0
        %2269 = vmatpush1.msra.mxu0 0.0
        %2270 = vmatprep.subr.mxu0 0.0
        %2271 = vmatpush1.msra.mxu0 0.0
        %2272 = vmatprep.subr.mxu0 0.0
        %2273 = vmatpush1.msra.mxu0 0.0
        %2274 = vmatprep.subr.mxu0 0.0
        %2275 = vmatpush1.msra.mxu0 0.0
        %2276 = vmatprep.subr.mxu0 0.0
        %2277 = vmatpush1.msra.mxu0 0.0
        %2278 = vmatprep.subr.mxu0 0.0
        %2279 = vmatpush1.msra.mxu0 0.0
        %2280 = vmatprep.subr.mxu0 0.0
        %2281 = vmatpush1.msra.mxu0 0.0
        %2282 = vmatprep.subr.mxu0 0.0
        %2283 = vmatpush1.msra.mxu0 0.0
        %2284 = vmatprep.subr.mxu0 0.0
        %2285 = vmatpush1.msra.mxu0 0.0
        %2286 = vmatprep.subr.mxu0 0.0
        %2287 = vmatpush1.msra.mxu0 0.0
        %2288 = vmatprep.subr.mxu0 0.0
        %2289 = vmatpush1.msra.mxu0 0.0
        %2290 = vmatprep.subr.mxu0 0.0
        %2291 = vmatpush1.msra.mxu0 0.0
        %2292 = vmatprep.subr.mxu0 0.0
        %2293 = vmatpush1.msra.mxu0 0.0
        %2294 = vmatprep.subr.mxu0 0.0
        %2295 = vmatpush1.msra.mxu0 0.0
        %2296 = vmatprep.subr.mxu0 0.0
        %2297 = vmatpush1.msra.mxu0 0.0
        %2298 = vmatprep.subr.mxu0 0.0
        %2299 = vmatpush1.msra.mxu0 0.0
        %2300 = vmatprep.subr.mxu0 0.0
        %2301 = vmatpush1.msra.mxu0 0.0
        %2302 = vmatprep.subr.mxu0 0.0
        %2303 = vmatpush1.msra.mxu0 0.0
        %2304 = vmatprep.subr.mxu0 0.0
        %2305 = vmatpush1.msra.mxu0 0.0
        %2306 = vmatprep.subr.mxu0 0.0
        %2307 = vmatpush1.msra.mxu0 0.0
        %2308 = vmatprep.subr.mxu0 0.0
        %2309 = vmatpush1.msra.mxu0 0.0
        %2310 = vmatprep.subr.mxu0 0.0
        %2311 = vmatpush1.msra.mxu0 0.0
        %2312 = vmatprep.subr.mxu0 0.0
        %2313 = vmatpush1.msra.mxu0 0.0
        %2314 = vmatprep.subr.mxu0 0.0
        %2315 = vmatpush1.msra.mxu0 0.0
        %2316 = vmatprep.mubr.f32.mxu0 0.0
        %2317 = vmatmul.mubr.f32.gmra.mrb[0].mxu0 %v2037
        %v2318 = vpop.f32.mrb[0].mxu0
        %v2319 = vadd.f32 %v2035, %v2318
        %v2320 = vpop.f32.mrb[0].mxu0
        %v2321 = vadd.f32 %v2035, %v2320
        %2322 = vdwg.mxu0
        %vm2323 = vcmp.ge.f32.partialorder %v2106, 0.0
        %vm2324 = vcmp.ge.f32.partialorder %v2108, 0.0
        %vm2325 = vcmp.ge.f32.partialorder %v2177, 0.0
        %vm2326 = vcmp.ge.f32.partialorder %v2179, 0.0
        %vm2327 = vcmp.ge.f32.partialorder %v2248, 0.0
        %vm2328 = vcmp.ge.f32.partialorder %v2250, 0.0
        %vm2329 = vcmp.ge.f32.partialorder %v2319, 0.0
        %vm2330 = vcmp.ge.f32.partialorder %v2321, 0.0
        %v2331 = vmul.f32 %v2106, 0.01
        %v2332 = vmul.f32 %v2108, 0.01
        %v2333 = vmul.f32 %v2177, 0.01
        %v2334 = vmul.f32 %v2179, 0.01
        %v2335 = vmul.f32 %v2248, 0.01
        %v2336 = vmul.f32 %v2250, 0.01
        %v2337 = vmul.f32 %v2319, 0.01
        %v2338 = vmul.f32 %v2321, 0.01
        %v2339 = vsel %vm2323, %v2106, %v2331
        %v2340 = vsel %vm2324, %v2108, %v2332
        %v2341 = vsel %vm2325, %v2177, %v2333
        %v2342 = vsel %vm2326, %v2179, %v2334
        %v2343 = vsel %vm2327, %v2248, %v2335
        %v2344 = vsel %vm2328, %v2250, %v2336
        %v2345 = vsel %vm2329, %v2319, %v2337
        %v2346 = vsel %vm2330, %v2321, %v2338
        %v2347 = vld [vmem:[#allocation7 + $0x48] sm:$0x1]
        %2349 = vset.pattern.permute.xlu0 24
        %2350 = vperm.xlu0 %2349, %v2347
        %v2351 = vpop.permute.xlu0 %2350
        %v2353 = vsel %vm659, %v2347, 0
        %2355 = vmatprep.subr.mxu0 %v2340
        %2356 = vmatpush1.msra.mxu0 %v2339
        %2357 = vmatprep.subr.mxu0 %v265
        %2358 = vmatpush1.msra.mxu0 %v264
        %2359 = vmatprep.subr.mxu0 %v273
        %2360 = vmatpush1.msra.mxu0 %v272
        %2361 = vmatprep.subr.mxu0 0.0
        %2362 = vmatpush1.msra.mxu0 0.0
        %2363 = vmatprep.subr.mxu0 0.0
        %2364 = vmatpush1.msra.mxu0 0.0
        %2365 = vmatprep.subr.mxu0 0.0
        %2366 = vmatpush1.msra.mxu0 0.0
        %2367 = vmatprep.subr.mxu0 0.0
        %2368 = vmatpush1.msra.mxu0 0.0
        %2369 = vmatprep.subr.mxu0 0.0
        %2370 = vmatpush1.msra.mxu0 0.0
        %2371 = vmatprep.subr.mxu0 0.0
        %2372 = vmatpush1.msra.mxu0 0.0
        %2373 = vmatprep.subr.mxu0 0.0
        %2374 = vmatpush1.msra.mxu0 0.0
        %2375 = vmatprep.subr.mxu0 0.0
        %2376 = vmatpush1.msra.mxu0 0.0
        %2377 = vmatprep.subr.mxu0 0.0
        %2378 = vmatpush1.msra.mxu0 0.0
        %2379 = vmatprep.subr.mxu0 0.0
        %2380 = vmatpush1.msra.mxu0 0.0
        %2381 = vmatprep.subr.mxu0 0.0
        %2382 = vmatpush1.msra.mxu0 0.0
        %2383 = vmatprep.subr.mxu0 0.0
        %2384 = vmatpush1.msra.mxu0 0.0
        %2385 = vmatprep.subr.mxu0 0.0
        %2386 = vmatpush1.msra.mxu0 0.0
        %2387 = vmatprep.subr.mxu0 0.0
        %2388 = vmatpush1.msra.mxu0 0.0
        %2389 = vmatprep.subr.mxu0 0.0
        %2390 = vmatpush1.msra.mxu0 0.0
        %2391 = vmatprep.subr.mxu0 0.0
        %2392 = vmatpush1.msra.mxu0 0.0
        %2393 = vmatprep.subr.mxu0 0.0
        %2394 = vmatpush1.msra.mxu0 0.0
        %2395 = vmatprep.subr.mxu0 0.0
        %2396 = vmatpush1.msra.mxu0 0.0
        %2397 = vmatprep.subr.mxu0 0.0
        %2398 = vmatpush1.msra.mxu0 0.0
        %2399 = vmatprep.subr.mxu0 0.0
        %2400 = vmatpush1.msra.mxu0 0.0
        %2401 = vmatprep.subr.mxu0 0.0
        %2402 = vmatpush1.msra.mxu0 0.0
        %2403 = vmatprep.subr.mxu0 0.0
        %2404 = vmatpush1.msra.mxu0 0.0
        %2405 = vmatprep.subr.mxu0 0.0
        %2406 = vmatpush1.msra.mxu0 0.0
        %2407 = vmatprep.subr.mxu0 0.0
        %2408 = vmatpush1.msra.mxu0 0.0
        %2409 = vmatprep.subr.mxu0 0.0
        %2410 = vmatpush1.msra.mxu0 0.0
        %2411 = vmatprep.subr.mxu0 0.0
        %2412 = vmatpush1.msra.mxu0 0.0
        %2413 = vmatprep.subr.mxu0 0.0
        %2414 = vmatpush1.msra.mxu0 0.0
        %2415 = vmatprep.subr.mxu0 0.0
        %2416 = vmatpush1.msra.mxu0 0.0
        %2417 = vmatprep.subr.mxu0 0.0
        %2418 = vmatpush1.msra.mxu0 0.0
        %2419 = vmatprep.mubr.f32.mxu0 0.0
        %2420 = vmatmul.mubr.f32.gmra.mrb[0].mxu0 %v2353
        %v2421 = vpop.f32.mrb[0].mxu0
        %v2422 = vadd.f32 %v2351, %v2421
        %v2423 = vpop.f32.mrb[0].mxu0
        %v2424 = vadd.f32 %v2351, %v2423
        %2425 = vdwg.mxu0
        %2426 = vmatprep.subr.mxu0 %v2342
        %2427 = vmatpush1.msra.mxu0 %v2341
        %2428 = vmatprep.subr.mxu0 %v267
        %2429 = vmatpush1.msra.mxu0 %v266
        %2430 = vmatprep.subr.mxu0 %v275
        %2431 = vmatpush1.msra.mxu0 %v274
        %2432 = vmatprep.subr.mxu0 0.0
        %2433 = vmatpush1.msra.mxu0 0.0
        %2434 = vmatprep.subr.mxu0 0.0
        %2435 = vmatpush1.msra.mxu0 0.0
        %2436 = vmatprep.subr.mxu0 0.0
        %2437 = vmatpush1.msra.mxu0 0.0
        %2438 = vmatprep.subr.mxu0 0.0
        %2439 = vmatpush1.msra.mxu0 0.0
        %2440 = vmatprep.subr.mxu0 0.0
        %2441 = vmatpush1.msra.mxu0 0.0
        %2442 = vmatprep.subr.mxu0 0.0
        %2443 = vmatpush1.msra.mxu0 0.0
        %2444 = vmatprep.subr.mxu0 0.0
        %2445 = vmatpush1.msra.mxu0 0.0
        %2446 = vmatprep.subr.mxu0 0.0
        %2447 = vmatpush1.msra.mxu0 0.0
        %2448 = vmatprep.subr.mxu0 0.0
        %2449 = vmatpush1.msra.mxu0 0.0
        %2450 = vmatprep.subr.mxu0 0.0
        %2451 = vmatpush1.msra.mxu0 0.0
        %2452 = vmatprep.subr.mxu0 0.0
        %2453 = vmatpush1.msra.mxu0 0.0
        %2454 = vmatprep.subr.mxu0 0.0
        %2455 = vmatpush1.msra.mxu0 0.0
        %2456 = vmatprep.subr.mxu0 0.0
        %2457 = vmatpush1.msra.mxu0 0.0
        %2458 = vmatprep.subr.mxu0 0.0
        %2459 = vmatpush1.msra.mxu0 0.0
        %2460 = vmatprep.subr.mxu0 0.0
        %2461 = vmatpush1.msra.mxu0 0.0
        %2462 = vmatprep.subr.mxu0 0.0
        %2463 = vmatpush1.msra.mxu0 0.0
        %2464 = vmatprep.subr.mxu0 0.0
        %2465 = vmatpush1.msra.mxu0 0.0
        %2466 = vmatprep.subr.mxu0 0.0
        %2467 = vmatpush1.msra.mxu0 0.0
        %2468 = vmatprep.subr.mxu0 0.0
        %2469 = vmatpush1.msra.mxu0 0.0
        %2470 = vmatprep.subr.mxu0 0.0
        %2471 = vmatpush1.msra.mxu0 0.0
        %2472 = vmatprep.subr.mxu0 0.0
        %2473 = vmatpush1.msra.mxu0 0.0
        %2474 = vmatprep.subr.mxu0 0.0
        %2475 = vmatpush1.msra.mxu0 0.0
        %2476 = vmatprep.subr.mxu0 0.0
        %2477 = vmatpush1.msra.mxu0 0.0
        %2478 = vmatprep.subr.mxu0 0.0
        %2479 = vmatpush1.msra.mxu0 0.0
        %2480 = vmatprep.subr.mxu0 0.0
        %2481 = vmatpush1.msra.mxu0 0.0
        %2482 = vmatprep.subr.mxu0 0.0
        %2483 = vmatpush1.msra.mxu0 0.0
        %2484 = vmatprep.subr.mxu0 0.0
        %2485 = vmatpush1.msra.mxu0 0.0
        %2486 = vmatprep.subr.mxu0 0.0
        %2487 = vmatpush1.msra.mxu0 0.0
        %2488 = vmatprep.subr.mxu0 0.0
        %2489 = vmatpush1.msra.mxu0 0.0
        %2490 = vmatprep.mubr.f32.mxu0 0.0
        %2491 = vmatmul.mubr.f32.gmra.mrb[0].mxu0 %v2353
        %v2492 = vpop.f32.mrb[0].mxu0
        %v2493 = vadd.f32 %v2351, %v2492
        %v2494 = vpop.f32.mrb[0].mxu0
        %v2495 = vadd.f32 %v2351, %v2494
        %2496 = vdwg.mxu0
        %2497 = vmatprep.subr.mxu0 %v2344
        %2498 = vmatpush1.msra.mxu0 %v2343
        %2499 = vmatprep.subr.mxu0 %v269
        %2500 = vmatpush1.msra.mxu0 %v268
        %2501 = vmatprep.subr.mxu0 %v277
        %2502 = vmatpush1.msra.mxu0 %v276
        %2503 = vmatprep.subr.mxu0 0.0
        %2504 = vmatpush1.msra.mxu0 0.0
        %2505 = vmatprep.subr.mxu0 0.0
        %2506 = vmatpush1.msra.mxu0 0.0
        %2507 = vmatprep.subr.mxu0 0.0
        %2508 = vmatpush1.msra.mxu0 0.0
        %2509 = vmatprep.subr.mxu0 0.0
        %2510 = vmatpush1.msra.mxu0 0.0
        %2511 = vmatprep.subr.mxu0 0.0
        %2512 = vmatpush1.msra.mxu0 0.0
        %2513 = vmatprep.subr.mxu0 0.0
        %2514 = vmatpush1.msra.mxu0 0.0
        %2515 = vmatprep.subr.mxu0 0.0
        %2516 = vmatpush1.msra.mxu0 0.0
        %2517 = vmatprep.subr.mxu0 0.0
        %2518 = vmatpush1.msra.mxu0 0.0
        %2519 = vmatprep.subr.mxu0 0.0
        %2520 = vmatpush1.msra.mxu0 0.0
        %2521 = vmatprep.subr.mxu0 0.0
        %2522 = vmatpush1.msra.mxu0 0.0
        %2523 = vmatprep.subr.mxu0 0.0
        %2524 = vmatpush1.msra.mxu0 0.0
        %2525 = vmatprep.subr.mxu0 0.0
        %2526 = vmatpush1.msra.mxu0 0.0
        %2527 = vmatprep.subr.mxu0 0.0
        %2528 = vmatpush1.msra.mxu0 0.0
        %2529 = vmatprep.subr.mxu0 0.0
        %2530 = vmatpush1.msra.mxu0 0.0
        %2531 = vmatprep.subr.mxu0 0.0
        %2532 = vmatpush1.msra.mxu0 0.0
        %2533 = vmatprep.subr.mxu0 0.0
        %2534 = vmatpush1.msra.mxu0 0.0
        %2535 = vmatprep.subr.mxu0 0.0
        %2536 = vmatpush1.msra.mxu0 0.0
        %2537 = vmatprep.subr.mxu0 0.0
        %2538 = vmatpush1.msra.mxu0 0.0
        %2539 = vmatprep.subr.mxu0 0.0
        %2540 = vmatpush1.msra.mxu0 0.0
        %2541 = vmatprep.subr.mxu0 0.0
        %2542 = vmatpush1.msra.mxu0 0.0
        %2543 = vmatprep.subr.mxu0 0.0
        %2544 = vmatpush1.msra.mxu0 0.0
        %2545 = vmatprep.subr.mxu0 0.0
        %2546 = vmatpush1.msra.mxu0 0.0
        %2547 = vmatprep.subr.mxu0 0.0
        %2548 = vmatpush1.msra.mxu0 0.0
        %2549 = vmatprep.subr.mxu0 0.0
        %2550 = vmatpush1.msra.mxu0 0.0
        %2551 = vmatprep.subr.mxu0 0.0
        %2552 = vmatpush1.msra.mxu0 0.0
        %2553 = vmatprep.subr.mxu0 0.0
        %2554 = vmatpush1.msra.mxu0 0.0
        %2555 = vmatprep.subr.mxu0 0.0
        %2556 = vmatpush1.msra.mxu0 0.0
        %2557 = vmatprep.subr.mxu0 0.0
        %2558 = vmatpush1.msra.mxu0 0.0
        %2559 = vmatprep.subr.mxu0 0.0
        %2560 = vmatpush1.msra.mxu0 0.0
        %2561 = vmatprep.mubr.f32.mxu0 0.0
        %2562 = vmatmul.mubr.f32.gmra.mrb[0].mxu0 %v2353
        %v2563 = vpop.f32.mrb[0].mxu0
        %v2564 = vadd.f32 %v2351, %v2563
        %v2565 = vpop.f32.mrb[0].mxu0
        %v2566 = vadd.f32 %v2351, %v2565
        %2567 = vdwg.mxu0
        %2568 = vmatprep.subr.mxu0 %v2346
        %2569 = vmatpush1.msra.mxu0 %v2345
        %2570 = vmatprep.subr.mxu0 %v271
        %2571 = vmatpush1.msra.mxu0 %v270
        %2572 = vmatprep.subr.mxu0 %v279
        %2573 = vmatpush1.msra.mxu0 %v278
        %2574 = vmatprep.subr.mxu0 0.0
        %2575 = vmatpush1.msra.mxu0 0.0
        %2576 = vmatprep.subr.mxu0 0.0
        %2577 = vmatpush1.msra.mxu0 0.0
        %2578 = vmatprep.subr.mxu0 0.0
        %2579 = vmatpush1.msra.mxu0 0.0
        %2580 = vmatprep.subr.mxu0 0.0
        %2581 = vmatpush1.msra.mxu0 0.0
        %2582 = vmatprep.subr.mxu0 0.0
        %2583 = vmatpush1.msra.mxu0 0.0
        %2584 = vmatprep.subr.mxu0 0.0
        %2585 = vmatpush1.msra.mxu0 0.0
        %2586 = vmatprep.subr.mxu0 0.0
        %2587 = vmatpush1.msra.mxu0 0.0
        %2588 = vmatprep.subr.mxu0 0.0
        %2589 = vmatpush1.msra.mxu0 0.0
        %2590 = vmatprep.subr.mxu0 0.0
        %2591 = vmatpush1.msra.mxu0 0.0
        %2592 = vmatprep.subr.mxu0 0.0
        %2593 = vmatpush1.msra.mxu0 0.0
        %2594 = vmatprep.subr.mxu0 0.0
        %2595 = vmatpush1.msra.mxu0 0.0
        %2596 = vmatprep.subr.mxu0 0.0
        %2597 = vmatpush1.msra.mxu0 0.0
        %2598 = vmatprep.subr.mxu0 0.0
        %2599 = vmatpush1.msra.mxu0 0.0
        %2600 = vmatprep.subr.mxu0 0.0
        %2601 = vmatpush1.msra.mxu0 0.0
        %2602 = vmatprep.subr.mxu0 0.0
        %2603 = vmatpush1.msra.mxu0 0.0
        %2604 = vmatprep.subr.mxu0 0.0
        %2605 = vmatpush1.msra.mxu0 0.0
        %2606 = vmatprep.subr.mxu0 0.0
        %2607 = vmatpush1.msra.mxu0 0.0
        %2608 = vmatprep.subr.mxu0 0.0
        %2609 = vmatpush1.msra.mxu0 0.0
        %2610 = vmatprep.subr.mxu0 0.0
        %2611 = vmatpush1.msra.mxu0 0.0
        %2612 = vmatprep.subr.mxu0 0.0
        %2613 = vmatpush1.msra.mxu0 0.0
        %2614 = vmatprep.subr.mxu0 0.0
        %2615 = vmatpush1.msra.mxu0 0.0
        %2616 = vmatprep.subr.mxu0 0.0
        %2617 = vmatpush1.msra.mxu0 0.0
        %2618 = vmatprep.subr.mxu0 0.0
        %2619 = vmatpush1.msra.mxu0 0.0
        %2620 = vmatprep.subr.mxu0 0.0
        %2621 = vmatpush1.msra.mxu0 0.0
        %2622 = vmatprep.subr.mxu0 0.0
        %2623 = vmatpush1.msra.mxu0 0.0
        %2624 = vmatprep.subr.mxu0 0.0
        %2625 = vmatpush1.msra.mxu0 0.0
        %2626 = vmatprep.subr.mxu0 0.0
        %2627 = vmatpush1.msra.mxu0 0.0
        %2628 = vmatprep.subr.mxu0 0.0
        %2629 = vmatpush1.msra.mxu0 0.0
        %2630 = vmatprep.subr.mxu0 0.0
        %2631 = vmatpush1.msra.mxu0 0.0
        %2632 = vmatprep.mubr.f32.mxu0 0.0
        %2633 = vmatmul.mubr.f32.gmra.mrb[0].mxu0 %v2353
        %v2634 = vpop.f32.mrb[0].mxu0
        %v2635 = vadd.f32 %v2351, %v2634
        %v2636 = vpop.f32.mrb[0].mxu0
        %v2637 = vadd.f32 %v2351, %v2636
        %2638 = vdwg.mxu0
        %v2639 = vxor.u32 %v2422, 2147483648
        %v2640 = vxor.u32 %v2424, 2147483648
        %v2641 = vxor.u32 %v2493, 2147483648
        %v2642 = vxor.u32 %v2495, 2147483648
        %v2643 = vxor.u32 %v2564, 2147483648
        %v2644 = vxor.u32 %v2566, 2147483648
        %v2645 = vxor.u32 %v2635, 2147483648
        %v2646 = vxor.u32 %v2637, 2147483648
        %v2647 = vmul.f32 %v2639, 1.442695
        %v2648 = vpow.pop %v2647
        %v2649 = vmul.f32 %v2640, 1.442695
        %v2650 = vpow.pop %v2649
        %v2651 = vmul.f32 %v2641, 1.442695
        %v2652 = vpow.pop %v2651
        %v2653 = vmul.f32 %v2642, 1.442695
        %v2654 = vpow.pop %v2653
        %v2655 = vmul.f32 %v2643, 1.442695
        %v2656 = vpow.pop %v2655
        %v2657 = vmul.f32 %v2644, 1.442695
        %v2658 = vpow.pop %v2657
        %v2659 = vmul.f32 %v2645, 1.442695
        %v2660 = vpow.pop %v2659
        %v2661 = vmul.f32 %v2646, 1.442695
        %v2662 = vpow.pop %v2661
        %v2663 = vadd.f32 %v2648, 1.0
        %v2664 = vadd.f32 %v2650, 1.0
        %v2665 = vadd.f32 %v2652, 1.0
        %v2666 = vadd.f32 %v2654, 1.0
        %v2667 = vadd.f32 %v2656, 1.0
        %v2668 = vadd.f32 %v2658, 1.0
        %v2669 = vadd.f32 %v2660, 1.0
        %v2670 = vadd.f32 %v2662, 1.0
        %v2671 = vrcp.pop %v2663
        %v2672 = vmul.f32 1.0, %v2671
        %v2673 = vrcp.pop %v2664
        %v2674 = vmul.f32 1.0, %v2673
        %v2675 = vrcp.pop %v2665
        %v2676 = vmul.f32 1.0, %v2675
        %v2677 = vrcp.pop %v2666
        %v2678 = vmul.f32 1.0, %v2677
        %v2679 = vrcp.pop %v2667
        %v2680 = vmul.f32 1.0, %v2679
        %v2681 = vrcp.pop %v2668
        %v2682 = vmul.f32 1.0, %v2681
        %v2683 = vrcp.pop %v2669
        %v2684 = vmul.f32 1.0, %v2683
        %v2685 = vrcp.pop %v2670
        %v2686 = vmul.f32 1.0, %v2685
        %v2695 = vcombine.low %v2672, %v2674
        %v2696 = vcombine.low %v2676, %v2678
        %v2697 = vcombine.low %v2680, %v2682
        %v2698 = vcombine.low %v2684, %v2686
        %v2700 = vunpack.c.l.s4 1966171168
        %v2701 = vunpack.c.0.s8 %v2700
        %v2702 = vlaneseq
        %v2703 = vshrl.u32 %v2702, 7
        %v2704 = vsub.s32 %v2701, %v2703
        %v2705 = vrot.slane %v2695, %v2704
        %v2707 = vunpack.c.l.s4 1966171168
        %v2708 = vunpack.c.0.s8 %v2707
        %v2709 = vlaneseq
        %v2710 = vshrl.u32 %v2709, 7
        %v2711 = vsub.s32 %v2708, %v2710
        %v2712 = vrot.slane %v2696, %v2711
        %v2714 = vunpack.c.l.s4 1966171168
        %v2715 = vunpack.c.0.s8 %v2714
        %v2716 = vlaneseq
        %v2717 = vshrl.u32 %v2716, 7
        %v2718 = vsub.s32 %v2715, %v2717
        %v2719 = vrot.slane %v2697, %v2718
        %v2721 = vunpack.c.l.s4 1966171168
        %v2722 = vunpack.c.0.s8 %v2721
        %v2723 = vlaneseq
        %v2724 = vshrl.u32 %v2723, 7
        %v2725 = vsub.s32 %v2722, %v2724
        %v2726 = vrot.slane %v2698, %v2725
        %v2727 = vcombine.low %v2705, %v2712
        %v2728 = vcombine.low %v2719, %v2726
        %v2730 = vunpack.c.l.s4 1966171168
        %v2731 = vunpack.c.0.s8 %v2730
        %v2732 = vlaneseq
        %v2733 = vshrl.u32 %v2732, 7
        %v2734 = vsub.s32 %v2731, %v2733
        %v2735 = vrot.slane %v2727, %v2734
        %v2737 = vunpack.c.l.s4 1966171168
        %v2738 = vunpack.c.0.s8 %v2737
        %v2739 = vlaneseq
        %v2740 = vshrl.u32 %v2739, 7
        %v2741 = vsub.s32 %v2738, %v2740
        %v2742 = vrot.slane %v2728, %v2741
        %v2743 = vcombine.low %v2735, %v2742
        %2745 = vst [vmem:[%s260] sm:$0xff] %v2743
        %s2746 = sand.u32 %s122, 1
        %s2747 = scalar_lea.sflag [#allocation4], %s2746
        %s2748 = sand.u32 %s122, 1
        %s2749 = smul.addr %s2748, 8
        %s2750 = scalar_lea.vmem [#allocation8], %s2749
        // Predicated region
        $region45: #{tpu_custom_call.1} parent=31 // pred_check
          %p2751 = pneg %p132
        $region46: #{tpu_custom_call.1} parent=31 // pred_check_branch
          %2753 = sbr.rel (%p2751) target = $region48
        $region47: #{tpu_custom_call.1} parent=31 // pred_region
          %s2754 = smul.u32 8, %s28
          %s2756 = ssub.s32 128, 128
          %2757 = vsyncadd %s2747, %s2756
          %s2758 = smul.addr %s27, 16
          %s2759 = sadd.s32 %s2754, %s2758
          %s2760 = smul.addr %s2759, 16
          %s2761 = scalar_lea.hbm %s3, %s2760
          %s2763 = sshll.u32 %s2750, 4
          %s2764 = int_to_ptr.vmem [resolvable:$true] %s2763
          %2766 = dma.vmem_to_hbm [thread:$0]  %s2764, 128, %s2761, %s2747
        $region48: #{tpu_custom_call.1} parent=31 // pred_fallthru
          _
      $region32: #{tpu_custom_call.1} parent=5 // pred_fallthru
        _
      %p2767 = scmp.le.s32.totalorder 2, %s18
      // Predicated region
      $region49: #{tpu_custom_call.1} parent=5 // pred_check
        %p2768 = pneg %p2767
      $region50: #{tpu_custom_call.1} parent=5 // pred_check_branch
        %2770 = sbr.rel (%p2768) target = $region52
      $region51: #{tpu_custom_call.1} parent=5 // pred_region
        %s2771 = ssub.s32 %s18, 2
        // Predicated region
        $region53: #{tpu_custom_call.1} parent=51 // pred_check
          %p2772 = pneg %p138
        $region54: #{tpu_custom_call.1} parent=51 // pred_check_branch
          %2774 = sbr.rel (%p2772) target = $region56
        $region55: #{tpu_custom_call.1} parent=51 // pred_region
          %s2775 = sand.u32 %s123, 1
          %s2776 = scalar_lea.sflag [#allocation4], %s2775
          %s2777 = sand.u32 %s123, 1
          %s2778 = smul.addr %s2777, 8
          %s2779 = scalar_lea.vmem [#allocation8], %s2778
          %2780 = dma.done %s2776, 128
        $region56: #{tpu_custom_call.1} parent=51 // pred_fallthru
          _
      $region52: #{tpu_custom_call.1} parent=5 // pred_fallthru
        _
    $region6: #{tpu_custom_call.1} parent=1 // loop_footer
      %s22 = sadd.s32 1, %s18
    $region7: #{tpu_custom_call.1} parent=1 // loop_footer_branch
      %17 = sbr.rel target = $region3
    $region8: #{tpu_custom_call.1} parent=1 // loop_exit
      _
    %2781 = vsyncpa [#allocation3], 1
    %s2782 = scalar_lea.sflag [#allocation3], 1
    %2783 = vsyncpa %s2782, 1
    %2784 = vsyncpa [#allocation6], 1
    %s2785 = scalar_lea.sflag [#allocation6], 1
    %2786 = vsyncpa %s2785, 1
    %2787 = vsyncpa [#allocation4], 1
    %s2788 = scalar_lea.sflag [#allocation4], 1
    %2789 = vsyncpa %s2788, 1

</llo_original>
